<compile_context>
chip_gen: v6e
topology: v6e:2x2x1
jax: 0.10.0
libtpu: 0.0.40
codegen_flags: <defaults>
</compile_context>

<pallas_src>
import jax
import jax.numpy as jnp
from jax.experimental import pallas as pl
from jax.experimental.pallas import tpu as pltpu


# ----------------------------------------------------------------------------- #
# Fused Pallas kernel
# ----------------------------------------------------------------------------- #
def _make_char_rnn_kernel(n_layers, T, B, H):
    """Builds the fused kernel for a fixed (n_layers, T, B, H) configuration.

    Ref layout (positional):
      x_ref                      : (T*B, I)   time-major flattened one-hot input
      per layer l:  wih (I_l,4H) | whh (H,4H) | b (1,4H)   [all pre-transposed]
      fcw_ref (H, V), fcb_ref (1, V), h0_ref (L,B,H), c0_ref (L,B,H)
      out_ref (T*B, V), hN_ref (L,B,H), cN_ref (L,B,H)
      y_sc    (T*B, H)  VMEM scratch holding the current layer's hidden slab
    """

    def kernel(*refs):
        x_ref = refs[0]
        w_refs = refs[1:1 + 3 * n_layers]
        fcw_ref, fcb_ref, h0_ref, c0_ref = refs[1 + 3 * n_layers:5 + 3 * n_layers]
        out_ref, hN_ref, cN_ref, y_sc = refs[5 + 3 * n_layers:]

        f32 = jnp.float32
        layer_in = x_ref[...]                                   # (T*B, I)

        for layer in range(n_layers):
            wih = w_refs[3 * layer + 0][...]                    # (I_l, 4H)
            whh = w_refs[3 * layer + 1][...]                    # (H, 4H)
            b = w_refs[3 * layer + 2][...]                      # (1, 4H) = b_ih + b_hh

            # Hoisted input projection (+ fused bias) for ALL timesteps at once:
            # one (T*B, I) x (I, 4H) GEMM instead of T tiny matmuls on the
            # serial critical path.
            xp = jnp.dot(layer_in, wih, preferred_element_type=f32) + b   # (T*B, 4H)

            h = h0_ref[layer]                                   # (B, H)
            c = c0_ref[layer]
            for t in range(T):                                  # serial recurrence (unrolled)
                g = xp[t * B:(t + 1) * B, :] + jnp.dot(
                    h, whh, preferred_element_type=f32)         # (B, 4H)
                # PyTorch gate order: i, f, g, o  (static lane slices)
                i_g = jax.nn.sigmoid(g[:, 0 * H:1 * H])
                f_g = jax.nn.sigmoid(g[:, 1 * H:2 * H])
                g_g = jnp.tanh(g[:, 2 * H:3 * H])
                o_g = jax.nn.sigmoid(g[:, 3 * H:4 * H])
                c = f_g * c + i_g * g_g
                h = o_g * jnp.tanh(c)
                y_sc[t * B:(t + 1) * B, :] = h
            hN_ref[layer] = h
            cN_ref[layer] = c
            # inter-layer dropout (nn.LSTM dropout) is identity at inference
            layer_in = y_sc[...]                                # (T*B, H)

        # Final Linear on the full VMEM-resident hidden slab (time-major rows).
        out_ref[...] = (jnp.dot(layer_in, fcw_ref[...], preferred_element_type=f32)
                        + fcb_ref[...]).astype(out_ref.dtype)

    return kernel


# ----------------------------------------------------------------------------- #
# Wrapper
# ----------------------------------------------------------------------------- #
def char_rnn_forward(params, x, hidden):
    """Matches CharRNN.forward: returns (out, (h_n, c_n)).

    x      : (B, T, vocab)  float32  (batch_first one-hot chars)
    hidden : (h0, c0), each (n_layers, B, n_hidden)
    out    : (B*T, vocab)
    """
    h0, c0 = hidden
    n_layers, B, H = h0.shape
    _, T, I = x.shape
    V = params["fc_w"].shape[0]

    # time-major, flattened rows for the hoisted per-layer input projection
    x_flat = jnp.transpose(x, (1, 0, 2)).reshape(T * B, I)

    # pre-transpose all weights once (outside the serial kernel)
    args = [x_flat]
    for (w_ih, w_hh, b) in params["lstm"]:
        args += [w_ih.T, w_hh.T, b]                        # (I_l,4H), (H,4H), (1,4H)
    args += [params["fc_w"].T, params["fc_b"].reshape(1, V), h0, c0]
    n_in = len(args)

    vmem = pl.BlockSpec(memory_space=pltpu.MemorySpace.VMEM)
    out_tb, h_n, c_n = pl.pallas_call(
        _make_char_rnn_kernel(n_layers, T, B, H),
        out_shape=(jax.ShapeDtypeStruct((T * B, V), jnp.float32),
                   jax.ShapeDtypeStruct((n_layers, B, H), jnp.float32),
                   jax.ShapeDtypeStruct((n_layers, B, H), jnp.float32)),
        in_specs=[vmem] * n_in,
        out_specs=(vmem, vmem, vmem),
        scratch_shapes=[pltpu.VMEM((T * B, H), jnp.float32)],
    )(*args)

    # PyTorch: r_output is batch_first -> out.contiguous().view(-1, n_hidden)
    # flattens in (b, t) order.  Reorder the time-major kernel output with a
    # cheap XLA transpose outside the serial kernel.
    out = out_tb.reshape(T, B, V).transpose(1, 0, 2).reshape(B * T, V)
    return out, (h_n, c_n)


# ----------------------------------------------------------------------------- #
# Pure-JAX reference (for correctness check)
# ----------------------------------------------------------------------------- #
def char_rnn_forward_ref(params, x, hidden):
    h0, c0 = hidden
    n_layers = h0.shape[0]
    B, T, _ = x.shape
    H = h0.shape[-1]
    layer_in = x
    h_finals, c_finals = [], []
    for layer in range(n_layers):
        w_ih, w_hh, b = params["lstm"][layer]
        h = h0[layer]
        c = c0[layer]
        ys = []
        for t in range(T):
            gates = layer_in[:, t, :] @ w_ih.T + h @ w_hh.T + b[0]
            i_g = jax.nn.sigmoid(gates[:, 0 * H:1 * H])
            f_g = jax.nn.sigmoid(gates[:, 1 * H:2 * H])
            g_g = jnp.tanh(gates[:, 2 * H:3 * H])
            o_g = jax.nn.sigmoid(gates[:, 3 * H:4 * H])
            c = f_g * c + i_g * g_g
            h = o_g * jnp.tanh(c)
            ys.append(h)
        layer_in = jnp.stack(ys, axis=1)
        h_finals.append(h)
        c_finals.append(c)
    flat = layer_in.reshape(B * T, H)
    out = flat @ params["fc_w"].T + params["fc_b"]
    return out, (jnp.stack(h_finals), jnp.stack(c_finals))


# ----------------------------------------------------------------------------- #
# Parameter init (deterministic, PyTorch-like uniform(-1/sqrt(H), 1/sqrt(H)))
# ----------------------------------------------------------------------------- #
def init_params(key, vocab, n_hidden, n_layers):
    k = 1.0 / jnp.sqrt(n_hidden)
    params = {"lstm": []}
    for layer in range(n_layers):
        in_dim = vocab if layer == 0 else n_hidden
        key, k1, k2, k3, k4 = jax.random.split(key, 5)
        w_ih = jax.random.uniform(k1, (4 * n_hidden, in_dim), jnp.float32, -k, k)
        w_hh = jax.random.uniform(k2, (4 * n_hidden, n_hidden), jnp.float32, -k, k)
        b_ih = jax.random.uniform(k3, (4 * n_hidden,), jnp.float32, -k, k)
        b_hh = jax.random.uniform(k4, (4 * n_hidden,), jnp.float32, -k, k)
        params["lstm"].append((w_ih, w_hh, (b_ih + b_hh).reshape(1, 4 * n_hidden)))
    key, k1, k2 = jax.random.split(key, 3)
    params["fc_w"] = jax.random.uniform(k1, (vocab, n_hidden), jnp.float32, -k, k)
    params["fc_b"] = jax.random.uniform(k2, (vocab,), jnp.float32, -k, k)
    return params


# ----------------------------------------------------------------------------- #
if __name__ == "__main__":
    VOCAB = 32      # len(tokens)
    N_HIDDEN = 32
    N_LAYERS = 2
    BATCH = 2
    SEQ = 8

    key = jax.random.PRNGKey(0)
    key, pk, xk = jax.random.split(key, 3)
    params = init_params(pk, VOCAB, N_HIDDEN, N_LAYERS)

    # one-hot char input, like CharRNN usage
    char_ids = jax.random.randint(xk, (BATCH, SEQ), 0, VOCAB)
    x = jax.nn.one_hot(char_ids, VOCAB, dtype=jnp.float32)     # (B, T, vocab)

    # init_hidden(batch_size): zeros of shape (n_layers, B, n_hidden)
    h0 = jnp.zeros((N_LAYERS, BATCH, N_HIDDEN), jnp.float32)
    c0 = jnp.zeros((N_LAYERS, BATCH, N_HIDDEN), jnp.float32)

    out, (h_n, c_n) = char_rnn_forward(params, x, (h0, c0))
    jax.block_until_ready(out)
    jax.block_until_ready(h_n)
    jax.block_until_ready(c_n)

    # sanity check against pure-JAX reference
    out_ref, (h_ref, c_ref) = char_rnn_forward_ref(params, x, (h0, c0))
    assert out.shape == (BATCH * SEQ, VOCAB)
    assert h_n.shape == (N_LAYERS, BATCH, N_HIDDEN)
    assert c_n.shape == (N_LAYERS, BATCH, N_HIDDEN)
    assert jnp.allclose(out, out_ref, atol=1e-5)
    assert jnp.allclose(h_n, h_ref, atol=1e-5)
    assert jnp.allclose(c_n, c_ref, atol=1e-5)

    print("KERNEL_OK")
</pallas_src>

<mosaic_0001>
module attributes {stable_mosaic.version = 11 : i64} {
  func.func @kernel(%arg0: memref<16x32xf32, #tpu.memory_space<vmem>>, %arg1: memref<32x128xf32, #tpu.memory_space<vmem>>, %arg2: memref<32x128xf32, #tpu.memory_space<vmem>>, %arg3: memref<1x128xf32, #tpu.memory_space<vmem>>, %arg4: memref<32x128xf32, #tpu.memory_space<vmem>>, %arg5: memref<32x128xf32, #tpu.memory_space<vmem>>, %arg6: memref<1x128xf32, #tpu.memory_space<vmem>>, %arg7: memref<32x32xf32, #tpu.memory_space<vmem>>, %arg8: memref<1x32xf32, #tpu.memory_space<vmem>>, %arg9: memref<2x2x32xf32, #tpu.memory_space<vmem>>, %arg10: memref<2x2x32xf32, #tpu.memory_space<vmem>>, %arg11: memref<16x32xf32, #tpu.memory_space<vmem>>, %arg12: memref<2x2x32xf32, #tpu.memory_space<vmem>>, %arg13: memref<2x2x32xf32, #tpu.memory_space<vmem>>, %arg14: memref<16x32xf32, #tpu.memory_space<vmem>>) attributes {dimension_semantics = [], scalar_prefetch = 0 : i64, scratch_operands = 1 : i64, tpu.core_type = #tpu.core_type<tc>} {
    %c0 = arith.constant 0 : index
    %c0_0 = arith.constant 0 : index
    %0 = vector.load %arg0[%c0, %c0_0] : memref<16x32xf32, #tpu.memory_space<vmem>>, vector<16x32xf32>
    %c0_1 = arith.constant 0 : index
    %c0_2 = arith.constant 0 : index
    %1 = vector.load %arg1[%c0_1, %c0_2] : memref<32x128xf32, #tpu.memory_space<vmem>>, vector<32x128xf32>
    %c0_3 = arith.constant 0 : index
    %c0_4 = arith.constant 0 : index
    %2 = vector.load %arg2[%c0_3, %c0_4] : memref<32x128xf32, #tpu.memory_space<vmem>>, vector<32x128xf32>
    %c0_5 = arith.constant 0 : index
    %c0_6 = arith.constant 0 : index
    %3 = vector.load %arg3[%c0_5, %c0_6] : memref<1x128xf32, #tpu.memory_space<vmem>>, vector<1x128xf32>
    %cst = arith.constant dense<0.000000e+00> : vector<16x128xf32>
    %4 = tpu.matmul %0, %1, %cst {dimension_numbers = #tpu.dot_dimension_numbers<[1], [0], [0], [1], [0, 0, 1, 1], [], []>} : vector<16x32xf32>, vector<32x128xf32>, vector<16x128xf32> -> vector<16x128xf32>
    %5 = vector.broadcast %3 : vector<1x128xf32> to vector<16x128xf32>
    %6 = arith.addf %4, %5 : vector<16x128xf32>
    %c0_7 = arith.constant 0 : index
    %c0_8 = arith.constant 0 : index
    %c0_9 = arith.constant 0 : index
    %7 = vector.load %arg9[%c0_7, %c0_8, %c0_9] : memref<2x2x32xf32, #tpu.memory_space<vmem>>, vector<1x2x32xf32>
    %8 = vector.shape_cast %7 : vector<1x2x32xf32> to vector<2x32xf32>
    %c0_10 = arith.constant 0 : index
    %c0_11 = arith.constant 0 : index
    %c0_12 = arith.constant 0 : index
    %9 = vector.load %arg10[%c0_10, %c0_11, %c0_12] : memref<2x2x32xf32, #tpu.memory_space<vmem>>, vector<1x2x32xf32>
    %10 = vector.shape_cast %9 : vector<1x2x32xf32> to vector<2x32xf32>
    %11 = vector.extract_strided_slice %6 {offsets = [0, 0], sizes = [2, 128], strides = [1, 1]} : vector<16x128xf32> to vector<2x128xf32>
    %cst_13 = arith.constant dense<0.000000e+00> : vector<2x128xf32>
    %12 = tpu.matmul %8, %2, %cst_13 {dimension_numbers = #tpu.dot_dimension_numbers<[1], [0], [0], [1], [0, 0, 1, 1], [], []>} : vector<2x32xf32>, vector<32x128xf32>, vector<2x128xf32> -> vector<2x128xf32>
    %13 = arith.addf %11, %12 : vector<2x128xf32>
    %14 = vector.extract_strided_slice %13 {offsets = [0, 0], sizes = [2, 32], strides = [1, 1]} : vector<2x128xf32> to vector<2x32xf32>
    %15 = arith.negf %14 : vector<2x32xf32>
    %16 = math.exp %15 : vector<2x32xf32>
    %cst_14 = arith.constant 1.000000e+00 : f32
    %17 = vector.broadcast %cst_14 : f32 to vector<2x32xf32>
    %18 = arith.addf %17, %16 : vector<2x32xf32>
    %19 = arith.divf %17, %18 : vector<2x32xf32>
    %20 = vector.extract_strided_slice %13 {offsets = [0, 32], sizes = [2, 32], strides = [1, 1]} : vector<2x128xf32> to vector<2x32xf32>
    %21 = arith.negf %20 : vector<2x32xf32>
    %22 = math.exp %21 : vector<2x32xf32>
    %cst_15 = arith.constant 1.000000e+00 : f32
    %23 = vector.broadcast %cst_15 : f32 to vector<2x32xf32>
    %24 = arith.addf %23, %22 : vector<2x32xf32>
    %25 = arith.divf %23, %24 : vector<2x32xf32>
    %26 = vector.extract_strided_slice %13 {offsets = [0, 64], sizes = [2, 32], strides = [1, 1]} : vector<2x128xf32> to vector<2x32xf32>
    %27 = math.tanh %26 : vector<2x32xf32>
    %28 = vector.extract_strided_slice %13 {offsets = [0, 96], sizes = [2, 32], strides = [1, 1]} : vector<2x128xf32> to vector<2x32xf32>
    %29 = arith.negf %28 : vector<2x32xf32>
    %30 = math.exp %29 : vector<2x32xf32>
    %cst_16 = arith.constant 1.000000e+00 : f32
    %31 = vector.broadcast %cst_16 : f32 to vector<2x32xf32>
    %32 = arith.addf %31, %30 : vector<2x32xf32>
    %33 = arith.divf %31, %32 : vector<2x32xf32>
    %34 = arith.mulf %25, %10 : vector<2x32xf32>
    %35 = arith.mulf %19, %27 : vector<2x32xf32>
    %36 = arith.addf %34, %35 : vector<2x32xf32>
    %37 = math.tanh %36 : vector<2x32xf32>
    %38 = arith.mulf %33, %37 : vector<2x32xf32>
    %c0_17 = arith.constant 0 : index
    %c0_18 = arith.constant 0 : index
    %39 = vector.load %arg14[%c0_17, %c0_18] : memref<16x32xf32, #tpu.memory_space<vmem>>, vector<2x32xf32>
    tpu.vector_store %arg14[%c0_17, %c0_18], %38 {strides = array<i32>} : memref<16x32xf32, #tpu.memory_space<vmem>>, vector<2x32xf32>,
    %40 = vector.extract_strided_slice %6 {offsets = [2, 0], sizes = [2, 128], strides = [1, 1]} : vector<16x128xf32> to vector<2x128xf32>
    %cst_19 = arith.constant dense<0.000000e+00> : vector<2x128xf32>
    %41 = tpu.matmul %38, %2, %cst_19 {dimension_numbers = #tpu.dot_dimension_numbers<[1], [0], [0], [1], [0, 0, 1, 1], [], []>} : vector<2x32xf32>, vector<32x128xf32>, vector<2x128xf32> -> vector<2x128xf32>
    %42 = arith.addf %40, %41 : vector<2x128xf32>
    %43 = vector.extract_strided_slice %42 {offsets = [0, 0], sizes = [2, 32], strides = [1, 1]} : vector<2x128xf32> to vector<2x32xf32>
    %44 = arith.negf %43 : vector<2x32xf32>
    %45 = math.exp %44 : vector<2x32xf32>
    %cst_20 = arith.constant 1.000000e+00 : f32
    %46 = vector.broadcast %cst_20 : f32 to vector<2x32xf32>
    %47 = arith.addf %46, %45 : vector<2x32xf32>
    %48 = arith.divf %46, %47 : vector<2x32xf32>
    %49 = vector.extract_strided_slice %42 {offsets = [0, 32], sizes = [2, 32], strides = [1, 1]} : vector<2x128xf32> to vector<2x32xf32>
    %50 = arith.negf %49 : vector<2x32xf32>
    %51 = math.exp %50 : vector<2x32xf32>
    %cst_21 = arith.constant 1.000000e+00 : f32
    %52 = vector.broadcast %cst_21 : f32 to vector<2x32xf32>
    %53 = arith.addf %52, %51 : vector<2x32xf32>
    %54 = arith.divf %52, %53 : vector<2x32xf32>
    %55 = vector.extract_strided_slice %42 {offsets = [0, 64], sizes = [2, 32], strides = [1, 1]} : vector<2x128xf32> to vector<2x32xf32>
    %56 = math.tanh %55 : vector<2x32xf32>
    %57 = vector.extract_strided_slice %42 {offsets = [0, 96], sizes = [2, 32], strides = [1, 1]} : vector<2x128xf32> to vector<2x32xf32>
    %58 = arith.negf %57 : vector<2x32xf32>
    %59 = math.exp %58 : vector<2x32xf32>
    %cst_22 = arith.constant 1.000000e+00 : f32
    %60 = vector.broadcast %cst_22 : f32 to vector<2x32xf32>
    %61 = arith.addf %60, %59 : vector<2x32xf32>
    %62 = arith.divf %60, %61 : vector<2x32xf32>
    %63 = arith.mulf %54, %36 : vector<2x32xf32>
    %64 = arith.mulf %48, %56 : vector<2x32xf32>
    %65 = arith.addf %63, %64 : vector<2x32xf32>
    %66 = math.tanh %65 : vector<2x32xf32>
    %67 = arith.mulf %62, %66 : vector<2x32xf32>
    %c2 = arith.constant 2 : index
    %c0_23 = arith.constant 0 : index
    %68 = vector.load %arg14[%c2, %c0_23] : memref<16x32xf32, #tpu.memory_space<vmem>>, vector<2x32xf32>
    tpu.vector_store %arg14[%c2, %c0_23], %67 {strides = array<i32>} : memref<16x32xf32, #tpu.memory_space<vmem>>, vector<2x32xf32>,
    %69 = vector.extract_strided_slice %6 {offsets = [4, 0], sizes = [2, 128], strides = [1, 1]} : vector<16x128xf32> to vector<2x128xf32>
    %cst_24 = arith.constant dense<0.000000e+00> : vector<2x128xf32>
    %70 = tpu.matmul %67, %2, %cst_24 {dimension_numbers = #tpu.dot_dimension_numbers<[1], [0], [0], [1], [0, 0, 1, 1], [], []>} : vector<2x32xf32>, vector<32x128xf32>, vector<2x128xf32> -> vector<2x128xf32>
    %71 = arith.addf %69, %70 : vector<2x128xf32>
    %72 = vector.extract_strided_slice %71 {offsets = [0, 0], sizes = [2, 32], strides = [1, 1]} : vector<2x128xf32> to vector<2x32xf32>
    %73 = arith.negf %72 : vector<2x32xf32>
    %74 = math.exp %73 : vector<2x32xf32>
    %cst_25 = arith.constant 1.000000e+00 : f32
    %75 = vector.broadcast %cst_25 : f32 to vector<2x32xf32>
    %76 = arith.addf %75, %74 : vector<2x32xf32>
    %77 = arith.divf %75, %76 : vector<2x32xf32>
    %78 = vector.extract_strided_slice %71 {offsets = [0, 32], sizes = [2, 32], strides = [1, 1]} : vector<2x128xf32> to vector<2x32xf32>
    %79 = arith.negf %78 : vector<2x32xf32>
    %80 = math.exp %79 : vector<2x32xf32>
    %cst_26 = arith.constant 1.000000e+00 : f32
    %81 = vector.broadcast %cst_26 : f32 to vector<2x32xf32>
    %82 = arith.addf %81, %80 : vector<2x32xf32>
    %83 = arith.divf %81, %82 : vector<2x32xf32>
    %84 = vector.extract_strided_slice %71 {offsets = [0, 64], sizes = [2, 32], strides = [1, 1]} : vector<2x128xf32> to vector<2x32xf32>
    %85 = math.tanh %84 : vector<2x32xf32>
    %86 = vector.extract_strided_slice %71 {offsets = [0, 96], sizes = [2, 32], strides = [1, 1]} : vector<2x128xf32> to vector<2x32xf32>
    %87 = arith.negf %86 : vector<2x32xf32>
    %88 = math.exp %87 : vector<2x32xf32>
    %cst_27 = arith.constant 1.000000e+00 : f32
    %89 = vector.broadcast %cst_27 : f32 to vector<2x32xf32>
    %90 = arith.addf %89, %88 : vector<2x32xf32>
    %91 = arith.divf %89, %90 : vector<2x32xf32>
    %92 = arith.mulf %83, %65 : vector<2x32xf32>
    %93 = arith.mulf %77, %85 : vector<2x32xf32>
    %94 = arith.addf %92, %93 : vector<2x32xf32>
    %95 = math.tanh %94 : vector<2x32xf32>
    %96 = arith.mulf %91, %95 : vector<2x32xf32>
    %c4 = arith.constant 4 : index
    %c0_28 = arith.constant 0 : index
    %97 = vector.load %arg14[%c4, %c0_28] : memref<16x32xf32, #tpu.memory_space<vmem>>, vector<2x32xf32>
    tpu.vector_store %arg14[%c4, %c0_28], %96 {strides = array<i32>} : memref<16x32xf32, #tpu.memory_space<vmem>>, vector<2x32xf32>,
    %98 = vector.extract_strided_slice %6 {offsets = [6, 0], sizes = [2, 128], strides = [1, 1]} : vector<16x128xf32> to vector<2x128xf32>
    %cst_29 = arith.constant dense<0.000000e+00> : vector<2x128xf32>
    %99 = tpu.matmul %96, %2, %cst_29 {dimension_numbers = #tpu.dot_dimension_numbers<[1], [0], [0], [1], [0, 0, 1, 1], [], []>} : vector<2x32xf32>, vector<32x128xf32>, vector<2x128xf32> -> vector<2x128xf32>
    %100 = arith.addf %98, %99 : vector<2x128xf32>
    %101 = vector.extract_strided_slice %100 {offsets = [0, 0], sizes = [2, 32], strides = [1, 1]} : vector<2x128xf32> to vector<2x32xf32>
    %102 = arith.negf %101 : vector<2x32xf32>
    %103 = math.exp %102 : vector<2x32xf32>
    %cst_30 = arith.constant 1.000000e+00 : f32
    %104 = vector.broadcast %cst_30 : f32 to vector<2x32xf32>
    %105 = arith.addf %104, %103 : vector<2x32xf32>
    %106 = arith.divf %104, %105 : vector<2x32xf32>
    %107 = vector.extract_strided_slice %100 {offsets = [0, 32], sizes = [2, 32], strides = [1, 1]} : vector<2x128xf32> to vector<2x32xf32>
    %108 = arith.negf %107 : vector<2x32xf32>
    %109 = math.exp %108 : vector<2x32xf32>
    %cst_31 = arith.constant 1.000000e+00 : f32
    %110 = vector.broadcast %cst_31 : f32 to vector<2x32xf32>
    %111 = arith.addf %110, %109 : vector<2x32xf32>
    %112 = arith.divf %110, %111 : vector<2x32xf32>
    %113 = vector.extract_strided_slice %100 {offsets = [0, 64], sizes = [2, 32], strides = [1, 1]} : vector<2x128xf32> to vector<2x32xf32>
    %114 = math.tanh %113 : vector<2x32xf32>
    %115 = vector.extract_strided_slice %100 {offsets = [0, 96], sizes = [2, 32], strides = [1, 1]} : vector<2x128xf32> to vector<2x32xf32>
    %116 = arith.negf %115 : vector<2x32xf32>
    %117 = math.exp %116 : vector<2x32xf32>
    %cst_32 = arith.constant 1.000000e+00 : f32
    %118 = vector.broadcast %cst_32 : f32 to vector<2x32xf32>
    %119 = arith.addf %118, %117 : vector<2x32xf32>
    %120 = arith.divf %118, %119 : vector<2x32xf32>
    %121 = arith.mulf %112, %94 : vector<2x32xf32>
    %122 = arith.mulf %106, %114 : vector<2x32xf32>
    %123 = arith.addf %121, %122 : vector<2x32xf32>
    %124 = math.tanh %123 : vector<2x32xf32>
    %125 = arith.mulf %120, %124 : vector<2x32xf32>
    %c6 = arith.constant 6 : index
    %c0_33 = arith.constant 0 : index
    %126 = vector.load %arg14[%c6, %c0_33] : memref<16x32xf32, #tpu.memory_space<vmem>>, vector<2x32xf32>
    tpu.vector_store %arg14[%c6, %c0_33], %125 {strides = array<i32>} : memref<16x32xf32, #tpu.memory_space<vmem>>, vector<2x32xf32>,
    %127 = vector.extract_strided_slice %6 {offsets = [8, 0], sizes = [2, 128], strides = [1, 1]} : vector<16x128xf32> to vector<2x128xf32>
    %cst_34 = arith.constant dense<0.000000e+00> : vector<2x128xf32>
    %128 = tpu.matmul %125, %2, %cst_34 {dimension_numbers = #tpu.dot_dimension_numbers<[1], [0], [0], [1], [0, 0, 1, 1], [], []>} : vector<2x32xf32>, vector<32x128xf32>, vector<2x128xf32> -> vector<2x128xf32>
    %129 = arith.addf %127, %128 : vector<2x128xf32>
    %130 = vector.extract_strided_slice %129 {offsets = [0, 0], sizes = [2, 32], strides = [1, 1]} : vector<2x128xf32> to vector<2x32xf32>
    %131 = arith.negf %130 : vector<2x32xf32>
    %132 = math.exp %131 : vector<2x32xf32>
    %cst_35 = arith.constant 1.000000e+00 : f32
    %133 = vector.broadcast %cst_35 : f32 to vector<2x32xf32>
    %134 = arith.addf %133, %132 : vector<2x32xf32>
    %135 = arith.divf %133, %134 : vector<2x32xf32>
    %136 = vector.extract_strided_slice %129 {offsets = [0, 32], sizes = [2, 32], strides = [1, 1]} : vector<2x128xf32> to vector<2x32xf32>
    %137 = arith.negf %136 : vector<2x32xf32>
    %138 = math.exp %137 : vector<2x32xf32>
    %cst_36 = arith.constant 1.000000e+00 : f32
    %139 = vector.broadcast %cst_36 : f32 to vector<2x32xf32>
    %140 = arith.addf %139, %138 : vector<2x32xf32>
    %141 = arith.divf %139, %140 : vector<2x32xf32>
    %142 = vector.extract_strided_slice %129 {offsets = [0, 64], sizes = [2, 32], strides = [1, 1]} : vector<2x128xf32> to vector<2x32xf32>
    %143 = math.tanh %142 : vector<2x32xf32>
    %144 = vector.extract_strided_slice %129 {offsets = [0, 96], sizes = [2, 32], strides = [1, 1]} : vector<2x128xf32> to vector<2x32xf32>
    %145 = arith.negf %144 : vector<2x32xf32>
    %146 = math.exp %145 : vector<2x32xf32>
    %cst_37 = arith.constant 1.000000e+00 : f32
    %147 = vector.broadcast %cst_37 : f32 to vector<2x32xf32>
    %148 = arith.addf %147, %146 : vector<2x32xf32>
    %149 = arith.divf %147, %148 : vector<2x32xf32>
    %150 = arith.mulf %141, %123 : vector<2x32xf32>
    %151 = arith.mulf %135, %143 : vector<2x32xf32>
    %152 = arith.addf %150, %151 : vector<2x32xf32>
    %153 = math.tanh %152 : vector<2x32xf32>
    %154 = arith.mulf %149, %153 : vector<2x32xf32>
    %c8 = arith.constant 8 : index
    %c0_38 = arith.constant 0 : index
    %155 = vector.load %arg14[%c8, %c0_38] : memref<16x32xf32, #tpu.memory_space<vmem>>, vector<2x32xf32>
    tpu.vector_store %arg14[%c8, %c0_38], %154 {strides = array<i32>} : memref<16x32xf32, #tpu.memory_space<vmem>>, vector<2x32xf32>,
    %156 = vector.extract_strided_slice %6 {offsets = [10, 0], sizes = [2, 128], strides = [1, 1]} : vector<16x128xf32> to vector<2x128xf32>
    %cst_39 = arith.constant dense<0.000000e+00> : vector<2x128xf32>
    %157 = tpu.matmul %154, %2, %cst_39 {dimension_numbers = #tpu.dot_dimension_numbers<[1], [0], [0], [1], [0, 0, 1, 1], [], []>} : vector<2x32xf32>, vector<32x128xf32>, vector<2x128xf32> -> vector<2x128xf32>
    %158 = arith.addf %156, %157 : vector<2x128xf32>
    %159 = vector.extract_strided_slice %158 {offsets = [0, 0], sizes = [2, 32], strides = [1, 1]} : vector<2x128xf32> to vector<2x32xf32>
    %160 = arith.negf %159 : vector<2x32xf32>
    %161 = math.exp %160 : vector<2x32xf32>
    %cst_40 = arith.constant 1.000000e+00 : f32
    %162 = vector.broadcast %cst_40 : f32 to vector<2x32xf32>
    %163 = arith.addf %162, %161 : vector<2x32xf32>
    %164 = arith.divf %162, %163 : vector<2x32xf32>
    %165 = vector.extract_strided_slice %158 {offsets = [0, 32], sizes = [2, 32], strides = [1, 1]} : vector<2x128xf32> to vector<2x32xf32>
    %166 = arith.negf %165 : vector<2x32xf32>
    %167 = math.exp %166 : vector<2x32xf32>
    %cst_41 = arith.constant 1.000000e+00 : f32
    %168 = vector.broadcast %cst_41 : f32 to vector<2x32xf32>
    %169 = arith.addf %168, %167 : vector<2x32xf32>
    %170 = arith.divf %168, %169 : vector<2x32xf32>
    %171 = vector.extract_strided_slice %158 {offsets = [0, 64], sizes = [2, 32], strides = [1, 1]} : vector<2x128xf32> to vector<2x32xf32>
    %172 = math.tanh %171 : vector<2x32xf32>
    %173 = vector.extract_strided_slice %158 {offsets = [0, 96], sizes = [2, 32], strides = [1, 1]} : vector<2x128xf32> to vector<2x32xf32>
    %174 = arith.negf %173 : vector<2x32xf32>
    %175 = math.exp %174 : vector<2x32xf32>
    %cst_42 = arith.constant 1.000000e+00 : f32
    %176 = vector.broadcast %cst_42 : f32 to vector<2x32xf32>
    %177 = arith.addf %176, %175 : vector<2x32xf32>
    %178 = arith.divf %176, %177 : vector<2x32xf32>
    %179 = arith.mulf %170, %152 : vector<2x32xf32>
    %180 = arith.mulf %164, %172 : vector<2x32xf32>
    %181 = arith.addf %179, %180 : vector<2x32xf32>
    %182 = math.tanh %181 : vector<2x32xf32>
    %183 = arith.mulf %178, %182 : vector<2x32xf32>
    %c10 = arith.constant 10 : index
    %c0_43 = arith.constant 0 : index
    %184 = vector.load %arg14[%c10, %c0_43] : memref<16x32xf32, #tpu.memory_space<vmem>>, vector<2x32xf32>
    tpu.vector_store %arg14[%c10, %c0_43], %183 {strides = array<i32>} : memref<16x32xf32, #tpu.memory_space<vmem>>, vector<2x32xf32>,
    %185 = vector.extract_strided_slice %6 {offsets = [12, 0], sizes = [2, 128], strides = [1, 1]} : vector<16x128xf32> to vector<2x128xf32>
    %cst_44 = arith.constant dense<0.000000e+00> : vector<2x128xf32>
    %186 = tpu.matmul %183, %2, %cst_44 {dimension_numbers = #tpu.dot_dimension_numbers<[1], [0], [0], [1], [0, 0, 1, 1], [], []>} : vector<2x32xf32>, vector<32x128xf32>, vector<2x128xf32> -> vector<2x128xf32>
    %187 = arith.addf %185, %186 : vector<2x128xf32>
    %188 = vector.extract_strided_slice %187 {offsets = [0, 0], sizes = [2, 32], strides = [1, 1]} : vector<2x128xf32> to vector<2x32xf32>
    %189 = arith.negf %188 : vector<2x32xf32>
    %190 = math.exp %189 : vector<2x32xf32>
    %cst_45 = arith.constant 1.000000e+00 : f32
    %191 = vector.broadcast %cst_45 : f32 to vector<2x32xf32>
    %192 = arith.addf %191, %190 : vector<2x32xf32>
    %193 = arith.divf %191, %192 : vector<2x32xf32>
    %194 = vector.extract_strided_slice %187 {offsets = [0, 32], sizes = [2, 32], strides = [1, 1]} : vector<2x128xf32> to vector<2x32xf32>
    %195 = arith.negf %194 : vector<2x32xf32>
    %196 = math.exp %195 : vector<2x32xf32>
    %cst_46 = arith.constant 1.000000e+00 : f32
    %197 = vector.broadcast %cst_46 : f32 to vector<2x32xf32>
    %198 = arith.addf %197, %196 : vector<2x32xf32>
    %199 = arith.divf %197, %198 : vector<2x32xf32>
    %200 = vector.extract_strided_slice %187 {offsets = [0, 64], sizes = [2, 32], strides = [1, 1]} : vector<2x128xf32> to vector<2x32xf32>
    %201 = math.tanh %200 : vector<2x32xf32>
    %202 = vector.extract_strided_slice %187 {offsets = [0, 96], sizes = [2, 32], strides = [1, 1]} : vector<2x128xf32> to vector<2x32xf32>
    %203 = arith.negf %202 : vector<2x32xf32>
    %204 = math.exp %203 : vector<2x32xf32>
    %cst_47 = arith.constant 1.000000e+00 : f32
    %205 = vector.broadcast %cst_47 : f32 to vector<2x32xf32>
    %206 = arith.addf %205, %204 : vector<2x32xf32>
    %207 = arith.divf %205, %206 : vector<2x32xf32>
    %208 = arith.mulf %199, %181 : vector<2x32xf32>
    %209 = arith.mulf %193, %201 : vector<2x32xf32>
    %210 = arith.addf %208, %209 : vector<2x32xf32>
    %211 = math.tanh %210 : vector<2x32xf32>
    %212 = arith.mulf %207, %211 : vector<2x32xf32>
    %c12 = arith.constant 12 : index
    %c0_48 = arith.constant 0 : index
    %213 = vector.load %arg14[%c12, %c0_48] : memref<16x32xf32, #tpu.memory_space<vmem>>, vector<2x32xf32>
    tpu.vector_store %arg14[%c12, %c0_48], %212 {strides = array<i32>} : memref<16x32xf32, #tpu.memory_space<vmem>>, vector<2x32xf32>,
    %214 = vector.extract_strided_slice %6 {offsets = [14, 0], sizes = [2, 128], strides = [1, 1]} : vector<16x128xf32> to vector<2x128xf32>
    %cst_49 = arith.constant dense<0.000000e+00> : vector<2x128xf32>
    %215 = tpu.matmul %212, %2, %cst_49 {dimension_numbers = #tpu.dot_dimension_numbers<[1], [0], [0], [1], [0, 0, 1, 1], [], []>} : vector<2x32xf32>, vector<32x128xf32>, vector<2x128xf32> -> vector<2x128xf32>
    %216 = arith.addf %214, %215 : vector<2x128xf32>
    %217 = vector.extract_strided_slice %216 {offsets = [0, 0], sizes = [2, 32], strides = [1, 1]} : vector<2x128xf32> to vector<2x32xf32>
    %218 = arith.negf %217 : vector<2x32xf32>
    %219 = math.exp %218 : vector<2x32xf32>
    %cst_50 = arith.constant 1.000000e+00 : f32
    %220 = vector.broadcast %cst_50 : f32 to vector<2x32xf32>
    %221 = arith.addf %220, %219 : vector<2x32xf32>
    %222 = arith.divf %220, %221 : vector<2x32xf32>
    %223 = vector.extract_strided_slice %216 {offsets = [0, 32], sizes = [2, 32], strides = [1, 1]} : vector<2x128xf32> to vector<2x32xf32>
    %224 = arith.negf %223 : vector<2x32xf32>
    %225 = math.exp %224 : vector<2x32xf32>
    %cst_51 = arith.constant 1.000000e+00 : f32
    %226 = vector.broadcast %cst_51 : f32 to vector<2x32xf32>
    %227 = arith.addf %226, %225 : vector<2x32xf32>
    %228 = arith.divf %226, %227 : vector<2x32xf32>
    %229 = vector.extract_strided_slice %216 {offsets = [0, 64], sizes = [2, 32], strides = [1, 1]} : vector<2x128xf32> to vector<2x32xf32>
    %230 = math.tanh %229 : vector<2x32xf32>
    %231 = vector.extract_strided_slice %216 {offsets = [0, 96], sizes = [2, 32], strides = [1, 1]} : vector<2x128xf32> to vector<2x32xf32>
    %232 = arith.negf %231 : vector<2x32xf32>
    %233 = math.exp %232 : vector<2x32xf32>
    %cst_52 = arith.constant 1.000000e+00 : f32
    %234 = vector.broadcast %cst_52 : f32 to vector<2x32xf32>
    %235 = arith.addf %234, %233 : vector<2x32xf32>
    %236 = arith.divf %234, %235 : vector<2x32xf32>
    %237 = arith.mulf %228, %210 : vector<2x32xf32>
    %238 = arith.mulf %222, %230 : vector<2x32xf32>
    %239 = arith.addf %237, %238 : vector<2x32xf32>
    %240 = math.tanh %239 : vector<2x32xf32>
    %241 = arith.mulf %236, %240 : vector<2x32xf32>
    %c14 = arith.constant 14 : index
    %c0_53 = arith.constant 0 : index
    %242 = vector.load %arg14[%c14, %c0_53] : memref<16x32xf32, #tpu.memory_space<vmem>>, vector<2x32xf32>
    tpu.vector_store %arg14[%c14, %c0_53], %241 {strides = array<i32>} : memref<16x32xf32, #tpu.memory_space<vmem>>, vector<2x32xf32>,
    %c0_54 = arith.constant 0 : index
    %c0_55 = arith.constant 0 : index
    %c0_56 = arith.constant 0 : index
    %243 = vector.load %arg12[%c0_54, %c0_55, %c0_56] : memref<2x2x32xf32, #tpu.memory_space<vmem>>, vector<1x2x32xf32>
    %244 = vector.shape_cast %243 : vector<1x2x32xf32> to vector<2x32xf32>
    %245 = vector.shape_cast %241 : vector<2x32xf32> to vector<1x2x32xf32>
    tpu.vector_store %arg12[%c0_54, %c0_55, %c0_56], %245 {strides = array<i32>} : memref<2x2x32xf32, #tpu.memory_space<vmem>>, vector<1x2x32xf32>,
    %c0_57 = arith.constant 0 : index
    %c0_58 = arith.constant 0 : index
    %c0_59 = arith.constant 0 : index
    %246 = vector.load %arg13[%c0_57, %c0_58, %c0_59] : memref<2x2x32xf32, #tpu.memory_space<vmem>>, vector<1x2x32xf32>
    %247 = vector.shape_cast %246 : vector<1x2x32xf32> to vector<2x32xf32>
    %248 = vector.shape_cast %239 : vector<2x32xf32> to vector<1x2x32xf32>
    tpu.vector_store %arg13[%c0_57, %c0_58, %c0_59], %248 {strides = array<i32>} : memref<2x2x32xf32, #tpu.memory_space<vmem>>, vector<1x2x32xf32>,
    %c0_60 = arith.constant 0 : index
    %c0_61 = arith.constant 0 : index
    %249 = vector.load %arg14[%c0_60, %c0_61] : memref<16x32xf32, #tpu.memory_space<vmem>>, vector<16x32xf32>
    %c0_62 = arith.constant 0 : index
    %c0_63 = arith.constant 0 : index
    %250 = vector.load %arg4[%c0_62, %c0_63] : memref<32x128xf32, #tpu.memory_space<vmem>>, vector<32x128xf32>
    %c0_64 = arith.constant 0 : index
    %c0_65 = arith.constant 0 : index
    %251 = vector.load %arg5[%c0_64, %c0_65] : memref<32x128xf32, #tpu.memory_space<vmem>>, vector<32x128xf32>
    %c0_66 = arith.constant 0 : index
    %c0_67 = arith.constant 0 : index
    %252 = vector.load %arg6[%c0_66, %c0_67] : memref<1x128xf32, #tpu.memory_space<vmem>>, vector<1x128xf32>
    %cst_68 = arith.constant dense<0.000000e+00> : vector<16x128xf32>
    %253 = tpu.matmul %249, %250, %cst_68 {dimension_numbers = #tpu.dot_dimension_numbers<[1], [0], [0], [1], [0, 0, 1, 1], [], []>} : vector<16x32xf32>, vector<32x128xf32>, vector<16x128xf32> -> vector<16x128xf32>
    %254 = vector.broadcast %252 : vector<1x128xf32> to vector<16x128xf32>
    %255 = arith.addf %253, %254 : vector<16x128xf32>
    %c1 = arith.constant 1 : index
    %c0_69 = arith.constant 0 : index
    %c0_70 = arith.constant 0 : index
    %256 = vector.load %arg9[%c1, %c0_69, %c0_70] : memref<2x2x32xf32, #tpu.memory_space<vmem>>, vector<1x2x32xf32>
    %257 = vector.shape_cast %256 : vector<1x2x32xf32> to vector<2x32xf32>
    %c1_71 = arith.constant 1 : index
    %c0_72 = arith.constant 0 : index
    %c0_73 = arith.constant 0 : index
    %258 = vector.load %arg10[%c1_71, %c0_72, %c0_73] : memref<2x2x32xf32, #tpu.memory_space<vmem>>, vector<1x2x32xf32>
    %259 = vector.shape_cast %258 : vector<1x2x32xf32> to vector<2x32xf32>
    %260 = vector.extract_strided_slice %255 {offsets = [0, 0], sizes = [2, 128], strides = [1, 1]} : vector<16x128xf32> to vector<2x128xf32>
    %cst_74 = arith.constant dense<0.000000e+00> : vector<2x128xf32>
    %261 = tpu.matmul %257, %251, %cst_74 {dimension_numbers = #tpu.dot_dimension_numbers<[1], [0], [0], [1], [0, 0, 1, 1], [], []>} : vector<2x32xf32>, vector<32x128xf32>, vector<2x128xf32> -> vector<2x128xf32>
    %262 = arith.addf %260, %261 : vector<2x128xf32>
    %263 = vector.extract_strided_slice %262 {offsets = [0, 0], sizes = [2, 32], strides = [1, 1]} : vector<2x128xf32> to vector<2x32xf32>
    %264 = arith.negf %263 : vector<2x32xf32>
    %265 = math.exp %264 : vector<2x32xf32>
    %cst_75 = arith.constant 1.000000e+00 : f32
    %266 = vector.broadcast %cst_75 : f32 to vector<2x32xf32>
    %267 = arith.addf %266, %265 : vector<2x32xf32>
    %268 = arith.divf %266, %267 : vector<2x32xf32>
    %269 = vector.extract_strided_slice %262 {offsets = [0, 32], sizes = [2, 32], strides = [1, 1]} : vector<2x128xf32> to vector<2x32xf32>
    %270 = arith.negf %269 : vector<2x32xf32>
    %271 = math.exp %270 : vector<2x32xf32>
    %cst_76 = arith.constant 1.000000e+00 : f32
    %272 = vector.broadcast %cst_76 : f32 to vector<2x32xf32>
    %273 = arith.addf %272, %271 : vector<2x32xf32>
    %274 = arith.divf %272, %273 : vector<2x32xf32>
    %275 = vector.extract_strided_slice %262 {offsets = [0, 64], sizes = [2, 32], strides = [1, 1]} : vector<2x128xf32> to vector<2x32xf32>
    %276 = math.tanh %275 : vector<2x32xf32>
    %277 = vector.extract_strided_slice %262 {offsets = [0, 96], sizes = [2, 32], strides = [1, 1]} : vector<2x128xf32> to vector<2x32xf32>
    %278 = arith.negf %277 : vector<2x32xf32>
    %279 = math.exp %278 : vector<2x32xf32>
    %cst_77 = arith.constant 1.000000e+00 : f32
    %280 = vector.broadcast %cst_77 : f32 to vector<2x32xf32>
    %281 = arith.addf %280, %279 : vector<2x32xf32>
    %282 = arith.divf %280, %281 : vector<2x32xf32>
    %283 = arith.mulf %274, %259 : vector<2x32xf32>
    %284 = arith.mulf %268, %276 : vector<2x32xf32>
    %285 = arith.addf %283, %284 : vector<2x32xf32>
    %286 = math.tanh %285 : vector<2x32xf32>
    %287 = arith.mulf %282, %286 : vector<2x32xf32>
    %c0_78 = arith.constant 0 : index
    %c0_79 = arith.constant 0 : index
    %288 = vector.load %arg14[%c0_78, %c0_79] : memref<16x32xf32, #tpu.memory_space<vmem>>, vector<2x32xf32>
    tpu.vector_store %arg14[%c0_78, %c0_79], %287 {strides = array<i32>} : memref<16x32xf32, #tpu.memory_space<vmem>>, vector<2x32xf32>,
    %289 = vector.extract_strided_slice %255 {offsets = [2, 0], sizes = [2, 128], strides = [1, 1]} : vector<16x128xf32> to vector<2x128xf32>
    %cst_80 = arith.constant dense<0.000000e+00> : vector<2x128xf32>
    %290 = tpu.matmul %287, %251, %cst_80 {dimension_numbers = #tpu.dot_dimension_numbers<[1], [0], [0], [1], [0, 0, 1, 1], [], []>} : vector<2x32xf32>, vector<32x128xf32>, vector<2x128xf32> -> vector<2x128xf32>
    %291 = arith.addf %289, %290 : vector<2x128xf32>
    %292 = vector.extract_strided_slice %291 {offsets = [0, 0], sizes = [2, 32], strides = [1, 1]} : vector<2x128xf32> to vector<2x32xf32>
    %293 = arith.negf %292 : vector<2x32xf32>
    %294 = math.exp %293 : vector<2x32xf32>
    %cst_81 = arith.constant 1.000000e+00 : f32
    %295 = vector.broadcast %cst_81 : f32 to vector<2x32xf32>
    %296 = arith.addf %295, %294 : vector<2x32xf32>
    %297 = arith.divf %295, %296 : vector<2x32xf32>
    %298 = vector.extract_strided_slice %291 {offsets = [0, 32], sizes = [2, 32], strides = [1, 1]} : vector<2x128xf32> to vector<2x32xf32>
    %299 = arith.negf %298 : vector<2x32xf32>
    %300 = math.exp %299 : vector<2x32xf32>
    %cst_82 = arith.constant 1.000000e+00 : f32
    %301 = vector.broadcast %cst_82 : f32 to vector<2x32xf32>
    %302 = arith.addf %301, %300 : vector<2x32xf32>
    %303 = arith.divf %301, %302 : vector<2x32xf32>
    %304 = vector.extract_strided_slice %291 {offsets = [0, 64], sizes = [2, 32], strides = [1, 1]} : vector<2x128xf32> to vector<2x32xf32>
    %305 = math.tanh %304 : vector<2x32xf32>
    %306 = vector.extract_strided_slice %291 {offsets = [0, 96], sizes = [2, 32], strides = [1, 1]} : vector<2x128xf32> to vector<2x32xf32>
    %307 = arith.negf %306 : vector<2x32xf32>
    %308 = math.exp %307 : vector<2x32xf32>
    %cst_83 = arith.constant 1.000000e+00 : f32
    %309 = vector.broadcast %cst_83 : f32 to vector<2x32xf32>
    %310 = arith.addf %309, %308 : vector<2x32xf32>
    %311 = arith.divf %309, %310 : vector<2x32xf32>
    %312 = arith.mulf %303, %285 : vector<2x32xf32>
    %313 = arith.mulf %297, %305 : vector<2x32xf32>
    %314 = arith.addf %312, %313 : vector<2x32xf32>
    %315 = math.tanh %314 : vector<2x32xf32>
    %316 = arith.mulf %311, %315 : vector<2x32xf32>
    %c2_84 = arith.constant 2 : index
    %c0_85 = arith.constant 0 : index
    %317 = vector.load %arg14[%c2_84, %c0_85] : memref<16x32xf32, #tpu.memory_space<vmem>>, vector<2x32xf32>
    tpu.vector_store %arg14[%c2_84, %c0_85], %316 {strides = array<i32>} : memref<16x32xf32, #tpu.memory_space<vmem>>, vector<2x32xf32>,
    %318 = vector.extract_strided_slice %255 {offsets = [4, 0], sizes = [2, 128], strides = [1, 1]} : vector<16x128xf32> to vector<2x128xf32>
    %cst_86 = arith.constant dense<0.000000e+00> : vector<2x128xf32>
    %319 = tpu.matmul %316, %251, %cst_86 {dimension_numbers = #tpu.dot_dimension_numbers<[1], [0], [0], [1], [0, 0, 1, 1], [], []>} : vector<2x32xf32>, vector<32x128xf32>, vector<2x128xf32> -> vector<2x128xf32>
    %320 = arith.addf %318, %319 : vector<2x128xf32>
    %321 = vector.extract_strided_slice %320 {offsets = [0, 0], sizes = [2, 32], strides = [1, 1]} : vector<2x128xf32> to vector<2x32xf32>
    %322 = arith.negf %321 : vector<2x32xf32>
    %323 = math.exp %322 : vector<2x32xf32>
    %cst_87 = arith.constant 1.000000e+00 : f32
    %324 = vector.broadcast %cst_87 : f32 to vector<2x32xf32>
    %325 = arith.addf %324, %323 : vector<2x32xf32>
    %326 = arith.divf %324, %325 : vector<2x32xf32>
    %327 = vector.extract_strided_slice %320 {offsets = [0, 32], sizes = [2, 32], strides = [1, 1]} : vector<2x128xf32> to vector<2x32xf32>
    %328 = arith.negf %327 : vector<2x32xf32>
    %329 = math.exp %328 : vector<2x32xf32>
    %cst_88 = arith.constant 1.000000e+00 : f32
    %330 = vector.broadcast %cst_88 : f32 to vector<2x32xf32>
    %331 = arith.addf %330, %329 : vector<2x32xf32>
    %332 = arith.divf %330, %331 : vector<2x32xf32>
    %333 = vector.extract_strided_slice %320 {offsets = [0, 64], sizes = [2, 32], strides = [1, 1]} : vector<2x128xf32> to vector<2x32xf32>
    %334 = math.tanh %333 : vector<2x32xf32>
    %335 = vector.extract_strided_slice %320 {offsets = [0, 96], sizes = [2, 32], strides = [1, 1]} : vector<2x128xf32> to vector<2x32xf32>
    %336 = arith.negf %335 : vector<2x32xf32>
    %337 = math.exp %336 : vector<2x32xf32>
    %cst_89 = arith.constant 1.000000e+00 : f32
    %338 = vector.broadcast %cst_89 : f32 to vector<2x32xf32>
    %339 = arith.addf %338, %337 : vector<2x32xf32>
    %340 = arith.divf %338, %339 : vector<2x32xf32>
    %341 = arith.mulf %332, %314 : vector<2x32xf32>
    %342 = arith.mulf %326, %334 : vector<2x32xf32>
    %343 = arith.addf %341, %342 : vector<2x32xf32>
    %344 = math.tanh %343 : vector<2x32xf32>
    %345 = arith.mulf %340, %344 : vector<2x32xf32>
    %c4_90 = arith.constant 4 : index
    %c0_91 = arith.constant 0 : index
    %346 = vector.load %arg14[%c4_90, %c0_91] : memref<16x32xf32, #tpu.memory_space<vmem>>, vector<2x32xf32>
    tpu.vector_store %arg14[%c4_90, %c0_91], %345 {strides = array<i32>} : memref<16x32xf32, #tpu.memory_space<vmem>>, vector<2x32xf32>,
    %347 = vector.extract_strided_slice %255 {offsets = [6, 0], sizes = [2, 128], strides = [1, 1]} : vector<16x128xf32> to vector<2x128xf32>
    %cst_92 = arith.constant dense<0.000000e+00> : vector<2x128xf32>
    %348 = tpu.matmul %345, %251, %cst_92 {dimension_numbers = #tpu.dot_dimension_numbers<[1], [0], [0], [1], [0, 0, 1, 1], [], []>} : vector<2x32xf32>, vector<32x128xf32>, vector<2x128xf32> -> vector<2x128xf32>
    %349 = arith.addf %347, %348 : vector<2x128xf32>
    %350 = vector.extract_strided_slice %349 {offsets = [0, 0], sizes = [2, 32], strides = [1, 1]} : vector<2x128xf32> to vector<2x32xf32>
    %351 = arith.negf %350 : vector<2x32xf32>
    %352 = math.exp %351 : vector<2x32xf32>
    %cst_93 = arith.constant 1.000000e+00 : f32
    %353 = vector.broadcast %cst_93 : f32 to vector<2x32xf32>
    %354 = arith.addf %353, %352 : vector<2x32xf32>
    %355 = arith.divf %353, %354 : vector<2x32xf32>
    %356 = vector.extract_strided_slice %349 {offsets = [0, 32], sizes = [2, 32], strides = [1, 1]} : vector<2x128xf32> to vector<2x32xf32>
    %357 = arith.negf %356 : vector<2x32xf32>
    %358 = math.exp %357 : vector<2x32xf32>
    %cst_94 = arith.constant 1.000000e+00 : f32
    %359 = vector.broadcast %cst_94 : f32 to vector<2x32xf32>
    %360 = arith.addf %359, %358 : vector<2x32xf32>
    %361 = arith.divf %359, %360 : vector<2x32xf32>
    %362 = vector.extract_strided_slice %349 {offsets = [0, 64], sizes = [2, 32], strides = [1, 1]} : vector<2x128xf32> to vector<2x32xf32>
    %363 = math.tanh %362 : vector<2x32xf32>
    %364 = vector.extract_strided_slice %349 {offsets = [0, 96], sizes = [2, 32], strides = [1, 1]} : vector<2x128xf32> to vector<2x32xf32>
    %365 = arith.negf %364 : vector<2x32xf32>
    %366 = math.exp %365 : vector<2x32xf32>
    %cst_95 = arith.constant 1.000000e+00 : f32
    %367 = vector.broadcast %cst_95 : f32 to vector<2x32xf32>
    %368 = arith.addf %367, %366 : vector<2x32xf32>
    %369 = arith.divf %367, %368 : vector<2x32xf32>
    %370 = arith.mulf %361, %343 : vector<2x32xf32>
    %371 = arith.mulf %355, %363 : vector<2x32xf32>
    %372 = arith.addf %370, %371 : vector<2x32xf32>
    %373 = math.tanh %372 : vector<2x32xf32>
    %374 = arith.mulf %369, %373 : vector<2x32xf32>
    %c6_96 = arith.constant 6 : index
    %c0_97 = arith.constant 0 : index
    %375 = vector.load %arg14[%c6_96, %c0_97] : memref<16x32xf32, #tpu.memory_space<vmem>>, vector<2x32xf32>
    tpu.vector_store %arg14[%c6_96, %c0_97], %374 {strides = array<i32>} : memref<16x32xf32, #tpu.memory_space<vmem>>, vector<2x32xf32>,
    %376 = vector.extract_strided_slice %255 {offsets = [8, 0], sizes = [2, 128], strides = [1, 1]} : vector<16x128xf32> to vector<2x128xf32>
    %cst_98 = arith.constant dense<0.000000e+00> : vector<2x128xf32>
    %377 = tpu.matmul %374, %251, %cst_98 {dimension_numbers = #tpu.dot_dimension_numbers<[1], [0], [0], [1], [0, 0, 1, 1], [], []>} : vector<2x32xf32>, vector<32x128xf32>, vector<2x128xf32> -> vector<2x128xf32>
    %378 = arith.addf %376, %377 : vector<2x128xf32>
    %379 = vector.extract_strided_slice %378 {offsets = [0, 0], sizes = [2, 32], strides = [1, 1]} : vector<2x128xf32> to vector<2x32xf32>
    %380 = arith.negf %379 : vector<2x32xf32>
    %381 = math.exp %380 : vector<2x32xf32>
    %cst_99 = arith.constant 1.000000e+00 : f32
    %382 = vector.broadcast %cst_99 : f32 to vector<2x32xf32>
    %383 = arith.addf %382, %381 : vector<2x32xf32>
    %384 = arith.divf %382, %383 : vector<2x32xf32>
    %385 = vector.extract_strided_slice %378 {offsets = [0, 32], sizes = [2, 32], strides = [1, 1]} : vector<2x128xf32> to vector<2x32xf32>
    %386 = arith.negf %385 : vector<2x32xf32>
    %387 = math.exp %386 : vector<2x32xf32>
    %cst_100 = arith.constant 1.000000e+00 : f32
    %388 = vector.broadcast %cst_100 : f32 to vector<2x32xf32>
    %389 = arith.addf %388, %387 : vector<2x32xf32>
    %390 = arith.divf %388, %389 : vector<2x32xf32>
    %391 = vector.extract_strided_slice %378 {offsets = [0, 64], sizes = [2, 32], strides = [1, 1]} : vector<2x128xf32> to vector<2x32xf32>
    %392 = math.tanh %391 : vector<2x32xf32>
    %393 = vector.extract_strided_slice %378 {offsets = [0, 96], sizes = [2, 32], strides = [1, 1]} : vector<2x128xf32> to vector<2x32xf32>
    %394 = arith.negf %393 : vector<2x32xf32>
    %395 = math.exp %394 : vector<2x32xf32>
    %cst_101 = arith.constant 1.000000e+00 : f32
    %396 = vector.broadcast %cst_101 : f32 to vector<2x32xf32>
    %397 = arith.addf %396, %395 : vector<2x32xf32>
    %398 = arith.divf %396, %397 : vector<2x32xf32>
    %399 = arith.mulf %390, %372 : vector<2x32xf32>
    %400 = arith.mulf %384, %392 : vector<2x32xf32>
    %401 = arith.addf %399, %400 : vector<2x32xf32>
    %402 = math.tanh %401 : vector<2x32xf32>
    %403 = arith.mulf %398, %402 : vector<2x32xf32>
    %c8_102 = arith.constant 8 : index
    %c0_103 = arith.constant 0 : index
    %404 = vector.load %arg14[%c8_102, %c0_103] : memref<16x32xf32, #tpu.memory_space<vmem>>, vector<2x32xf32>
    tpu.vector_store %arg14[%c8_102, %c0_103], %403 {strides = array<i32>} : memref<16x32xf32, #tpu.memory_space<vmem>>, vector<2x32xf32>,
    %405 = vector.extract_strided_slice %255 {offsets = [10, 0], sizes = [2, 128], strides = [1, 1]} : vector<16x128xf32> to vector<2x128xf32>
    %cst_104 = arith.constant dense<0.000000e+00> : vector<2x128xf32>
    %406 = tpu.matmul %403, %251, %cst_104 {dimension_numbers = #tpu.dot_dimension_numbers<[1], [0], [0], [1], [0, 0, 1, 1], [], []>} : vector<2x32xf32>, vector<32x128xf32>, vector<2x128xf32> -> vector<2x128xf32>
    %407 = arith.addf %405, %406 : vector<2x128xf32>
    %408 = vector.extract_strided_slice %407 {offsets = [0, 0], sizes = [2, 32], strides = [1, 1]} : vector<2x128xf32> to vector<2x32xf32>
    %409 = arith.negf %408 : vector<2x32xf32>
    %410 = math.exp %409 : vector<2x32xf32>
    %cst_105 = arith.constant 1.000000e+00 : f32
    %411 = vector.broadcast %cst_105 : f32 to vector<2x32xf32>
    %412 = arith.addf %411, %410 : vector<2x32xf32>
    %413 = arith.divf %411, %412 : vector<2x32xf32>
    %414 = vector.extract_strided_slice %407 {offsets = [0, 32], sizes = [2, 32], strides = [1, 1]} : vector<2x128xf32> to vector<2x32xf32>
    %415 = arith.negf %414 : vector<2x32xf32>
    %416 = math.exp %415 : vector<2x32xf32>
    %cst_106 = arith.constant 1.000000e+00 : f32
    %417 = vector.broadcast %cst_106 : f32 to vector<2x32xf32>
    %418 = arith.addf %417, %416 : vector<2x32xf32>
    %419 = arith.divf %417, %418 : vector<2x32xf32>
    %420 = vector.extract_strided_slice %407 {offsets = [0, 64], sizes = [2, 32], strides = [1, 1]} : vector<2x128xf32> to vector<2x32xf32>
    %421 = math.tanh %420 : vector<2x32xf32>
    %422 = vector.extract_strided_slice %407 {offsets = [0, 96], sizes = [2, 32], strides = [1, 1]} : vector<2x128xf32> to vector<2x32xf32>
    %423 = arith.negf %422 : vector<2x32xf32>
    %424 = math.exp %423 : vector<2x32xf32>
    %cst_107 = arith.constant 1.000000e+00 : f32
    %425 = vector.broadcast %cst_107 : f32 to vector<2x32xf32>
    %426 = arith.addf %425, %424 : vector<2x32xf32>
    %427 = arith.divf %425, %426 : vector<2x32xf32>
    %428 = arith.mulf %419, %401 : vector<2x32xf32>
    %429 = arith.mulf %413, %421 : vector<2x32xf32>
    %430 = arith.addf %428, %429 : vector<2x32xf32>
    %431 = math.tanh %430 : vector<2x32xf32>
    %432 = arith.mulf %427, %431 : vector<2x32xf32>
    %c10_108 = arith.constant 10 : index
    %c0_109 = arith.constant 0 : index
    %433 = vector.load %arg14[%c10_108, %c0_109] : memref<16x32xf32, #tpu.memory_space<vmem>>, vector<2x32xf32>
    tpu.vector_store %arg14[%c10_108, %c0_109], %432 {strides = array<i32>} : memref<16x32xf32, #tpu.memory_space<vmem>>, vector<2x32xf32>,
    %434 = vector.extract_strided_slice %255 {offsets = [12, 0], sizes = [2, 128], strides = [1, 1]} : vector<16x128xf32> to vector<2x128xf32>
    %cst_110 = arith.constant dense<0.000000e+00> : vector<2x128xf32>
    %435 = tpu.matmul %432, %251, %cst_110 {dimension_numbers = #tpu.dot_dimension_numbers<[1], [0], [0], [1], [0, 0, 1, 1], [], []>} : vector<2x32xf32>, vector<32x128xf32>, vector<2x128xf32> -> vector<2x128xf32>
    %436 = arith.addf %434, %435 : vector<2x128xf32>
    %437 = vector.extract_strided_slice %436 {offsets = [0, 0], sizes = [2, 32], strides = [1, 1]} : vector<2x128xf32> to vector<2x32xf32>
    %438 = arith.negf %437 : vector<2x32xf32>
    %439 = math.exp %438 : vector<2x32xf32>
    %cst_111 = arith.constant 1.000000e+00 : f32
    %440 = vector.broadcast %cst_111 : f32 to vector<2x32xf32>
    %441 = arith.addf %440, %439 : vector<2x32xf32>
    %442 = arith.divf %440, %441 : vector<2x32xf32>
    %443 = vector.extract_strided_slice %436 {offsets = [0, 32], sizes = [2, 32], strides = [1, 1]} : vector<2x128xf32> to vector<2x32xf32>
    %444 = arith.negf %443 : vector<2x32xf32>
    %445 = math.exp %444 : vector<2x32xf32>
    %cst_112 = arith.constant 1.000000e+00 : f32
    %446 = vector.broadcast %cst_112 : f32 to vector<2x32xf32>
    %447 = arith.addf %446, %445 : vector<2x32xf32>
    %448 = arith.divf %446, %447 : vector<2x32xf32>
    %449 = vector.extract_strided_slice %436 {offsets = [0, 64], sizes = [2, 32], strides = [1, 1]} : vector<2x128xf32> to vector<2x32xf32>
    %450 = math.tanh %449 : vector<2x32xf32>
    %451 = vector.extract_strided_slice %436 {offsets = [0, 96], sizes = [2, 32], strides = [1, 1]} : vector<2x128xf32> to vector<2x32xf32>
    %452 = arith.negf %451 : vector<2x32xf32>
    %453 = math.exp %452 : vector<2x32xf32>
    %cst_113 = arith.constant 1.000000e+00 : f32
    %454 = vector.broadcast %cst_113 : f32 to vector<2x32xf32>
    %455 = arith.addf %454, %453 : vector<2x32xf32>
    %456 = arith.divf %454, %455 : vector<2x32xf32>
    %457 = arith.mulf %448, %430 : vector<2x32xf32>
    %458 = arith.mulf %442, %450 : vector<2x32xf32>
    %459 = arith.addf %457, %458 : vector<2x32xf32>
    %460 = math.tanh %459 : vector<2x32xf32>
    %461 = arith.mulf %456, %460 : vector<2x32xf32>
    %c12_114 = arith.constant 12 : index
    %c0_115 = arith.constant 0 : index
    %462 = vector.load %arg14[%c12_114, %c0_115] : memref<16x32xf32, #tpu.memory_space<vmem>>, vector<2x32xf32>
    tpu.vector_store %arg14[%c12_114, %c0_115], %461 {strides = array<i32>} : memref<16x32xf32, #tpu.memory_space<vmem>>, vector<2x32xf32>,
    %463 = vector.extract_strided_slice %255 {offsets = [14, 0], sizes = [2, 128], strides = [1, 1]} : vector<16x128xf32> to vector<2x128xf32>
    %cst_116 = arith.constant dense<0.000000e+00> : vector<2x128xf32>
    %464 = tpu.matmul %461, %251, %cst_116 {dimension_numbers = #tpu.dot_dimension_numbers<[1], [0], [0], [1], [0, 0, 1, 1], [], []>} : vector<2x32xf32>, vector<32x128xf32>, vector<2x128xf32> -> vector<2x128xf32>
    %465 = arith.addf %463, %464 : vector<2x128xf32>
    %466 = vector.extract_strided_slice %465 {offsets = [0, 0], sizes = [2, 32], strides = [1, 1]} : vector<2x128xf32> to vector<2x32xf32>
    %467 = arith.negf %466 : vector<2x32xf32>
    %468 = math.exp %467 : vector<2x32xf32>
    %cst_117 = arith.constant 1.000000e+00 : f32
    %469 = vector.broadcast %cst_117 : f32 to vector<2x32xf32>
    %470 = arith.addf %469, %468 : vector<2x32xf32>
    %471 = arith.divf %469, %470 : vector<2x32xf32>
    %472 = vector.extract_strided_slice %465 {offsets = [0, 32], sizes = [2, 32], strides = [1, 1]} : vector<2x128xf32> to vector<2x32xf32>
    %473 = arith.negf %472 : vector<2x32xf32>
    %474 = math.exp %473 : vector<2x32xf32>
    %cst_118 = arith.constant 1.000000e+00 : f32
    %475 = vector.broadcast %cst_118 : f32 to vector<2x32xf32>
    %476 = arith.addf %475, %474 : vector<2x32xf32>
    %477 = arith.divf %475, %476 : vector<2x32xf32>
    %478 = vector.extract_strided_slice %465 {offsets = [0, 64], sizes = [2, 32], strides = [1, 1]} : vector<2x128xf32> to vector<2x32xf32>
    %479 = math.tanh %478 : vector<2x32xf32>
    %480 = vector.extract_strided_slice %465 {offsets = [0, 96], sizes = [2, 32], strides = [1, 1]} : vector<2x128xf32> to vector<2x32xf32>
    %481 = arith.negf %480 : vector<2x32xf32>
    %482 = math.exp %481 : vector<2x32xf32>
    %cst_119 = arith.constant 1.000000e+00 : f32
    %483 = vector.broadcast %cst_119 : f32 to vector<2x32xf32>
    %484 = arith.addf %483, %482 : vector<2x32xf32>
    %485 = arith.divf %483, %484 : vector<2x32xf32>
    %486 = arith.mulf %477, %459 : vector<2x32xf32>
    %487 = arith.mulf %471, %479 : vector<2x32xf32>
    %488 = arith.addf %486, %487 : vector<2x32xf32>
    %489 = math.tanh %488 : vector<2x32xf32>
    %490 = arith.mulf %485, %489 : vector<2x32xf32>
    %c14_120 = arith.constant 14 : index
    %c0_121 = arith.constant 0 : index
    %491 = vector.load %arg14[%c14_120, %c0_121] : memref<16x32xf32, #tpu.memory_space<vmem>>, vector<2x32xf32>
    tpu.vector_store %arg14[%c14_120, %c0_121], %490 {strides = array<i32>} : memref<16x32xf32, #tpu.memory_space<vmem>>, vector<2x32xf32>,
    %c1_122 = arith.constant 1 : index
    %c0_123 = arith.constant 0 : index
    %c0_124 = arith.constant 0 : index
    %492 = vector.load %arg12[%c1_122, %c0_123, %c0_124] : memref<2x2x32xf32, #tpu.memory_space<vmem>>, vector<1x2x32xf32>
    %493 = vector.shape_cast %492 : vector<1x2x32xf32> to vector<2x32xf32>
    %494 = vector.shape_cast %490 : vector<2x32xf32> to vector<1x2x32xf32>
    tpu.vector_store %arg12[%c1_122, %c0_123, %c0_124], %494 {strides = array<i32>} : memref<2x2x32xf32, #tpu.memory_space<vmem>>, vector<1x2x32xf32>,
    %c1_125 = arith.constant 1 : index
    %c0_126 = arith.constant 0 : index
    %c0_127 = arith.constant 0 : index
    %495 = vector.load %arg13[%c1_125, %c0_126, %c0_127] : memref<2x2x32xf32, #tpu.memory_space<vmem>>, vector<1x2x32xf32>
    %496 = vector.shape_cast %495 : vector<1x2x32xf32> to vector<2x32xf32>
    %497 = vector.shape_cast %488 : vector<2x32xf32> to vector<1x2x32xf32>
    tpu.vector_store %arg13[%c1_125, %c0_126, %c0_127], %497 {strides = array<i32>} : memref<2x2x32xf32, #tpu.memory_space<vmem>>, vector<1x2x32xf32>,
    %c0_128 = arith.constant 0 : index
    %c0_129 = arith.constant 0 : index
    %498 = vector.load %arg14[%c0_128, %c0_129] : memref<16x32xf32, #tpu.memory_space<vmem>>, vector<16x32xf32>
    %c0_130 = arith.constant 0 : index
    %c0_131 = arith.constant 0 : index
    %499 = vector.load %arg7[%c0_130, %c0_131] : memref<32x32xf32, #tpu.memory_space<vmem>>, vector<32x32xf32>
    %cst_132 = arith.constant dense<0.000000e+00> : vector<16x32xf32>
    %500 = tpu.matmul %498, %499, %cst_132 {dimension_numbers = #tpu.dot_dimension_numbers<[1], [0], [0], [1], [0, 0, 1, 1], [], []>} : vector<16x32xf32>, vector<32x32xf32>, vector<16x32xf32> -> vector<16x32xf32>
    %c0_133 = arith.constant 0 : index
    %c0_134 = arith.constant 0 : index
    %501 = vector.load %arg8[%c0_133, %c0_134] : memref<1x32xf32, #tpu.memory_space<vmem>>, vector<1x32xf32>
    %502 = vector.broadcast %501 : vector<1x32xf32> to vector<16x32xf32>
    %503 = arith.addf %500, %502 : vector<16x32xf32>
    %c0_135 = arith.constant 0 : index
    %c0_136 = arith.constant 0 : index
    %504 = vector.load %arg11[%c0_135, %c0_136] : memref<16x32xf32, #tpu.memory_space<vmem>>, vector<16x32xf32>
    tpu.vector_store %arg11[%c0_135, %c0_136], %503 {strides = array<i32>} : memref<16x32xf32, #tpu.memory_space<vmem>>, vector<16x32xf32>,
    return
  }
}

</mosaic_0001>

<llo_original>
// kernel: tpu_custom_call.1
$region0: #{tpu_custom_call.1}
  #allocation0 [shape = 'u32[]', space=smem, size = 0x4, offset = 0x4, fixed_abs, tag = 'smem constant byte address 0x4 - core index']
  #allocation1 [shape = 'u32[144,128]{1,0:T(1,128)}', space=vmem, size = 0x12000, scoped, tag = 'internal scratch']
  #allocation2 [shape = 'f32[16,32]{1,0:T(8,128)}', space=vmem, size = 0x2000, scoped, tag = 'scratch operand']
  %s0 = inlined_call_operand.hbm [shape: f32[16,32], index: 0, kind: input, shape index: {}]
  %s1 = inlined_call_operand.hbm [shape: f32[32,128], index: 1, kind: input, shape index: {}]
  %s2 = inlined_call_operand.hbm [shape: f32[32,128], index: 2, kind: input, shape index: {}]
  %s3 = inlined_call_operand.vmem [shape: f32[1,128], index: 3, kind: input, shape index: {}]
  %s4 = inlined_call_operand.hbm [shape: f32[32,128], index: 4, kind: input, shape index: {}]
  %s5 = inlined_call_operand.hbm [shape: f32[32,128], index: 5, kind: input, shape index: {}]
  %s6 = inlined_call_operand.vmem [shape: f32[1,128], index: 6, kind: input, shape index: {}]
  %s7 = inlined_call_operand.hbm [shape: f32[32,32], index: 7, kind: input, shape index: {}]
  %s8 = inlined_call_operand.vmem [shape: f32[1,32], index: 8, kind: input, shape index: {}]
  %s9 = inlined_call_operand.vmem [shape: f32[2,2,32], index: 9, kind: input, shape index: {}]
  %s10 = inlined_call_operand.vmem [shape: f32[2,2,32], index: 10, kind: input, shape index: {}]
  %s11 = inlined_call_operand.hbm [shape: f32[16,32], index: 11, kind: output, shape index: {0}]
  %s12 = inlined_call_operand.hbm [shape: f32[2,2,32], index: 12, kind: output, shape index: {1}]
  %s13 = inlined_call_operand.hbm [shape: f32[2,2,32], index: 13, kind: output, shape index: {2}]
  %14 = xla_tuple %s11, %s12, %s13
  %s15 = sld [smem:[#allocation0]]
  $region94: #{tpu_custom_call.1} parent=0
    _
  %s17 = ssub.s32 1, %s15
  %s18 = scalar_select 0, %s17, %s15
  $region1: #{tpu_custom_call.1} parent=0
    #allocation3 [shape = 'u8[8192]{0}', space=vmem, size = 0x2000, scoped, tag = 'input window, operand 0, single buffered']
    #allocation4 [shape = 's32[1]{0}', space=sflag, size = 0x4, scoped, tag = 'scoped memory for tpu_custom_call.1']
    #allocation5 [shape = 's32[1]{0}', space=sflag, size = 0x4, scoped, tag = 'scoped memory for tpu_custom_call.1']
    #allocation6 [shape = 'u8[16384]{0}', space=vmem, size = 0x4000, scoped, tag = 'input window, operand 1, single buffered']
    #allocation7 [shape = 's32[1]{0}', space=sflag, size = 0x4, scoped, tag = 'scoped memory for tpu_custom_call.1']
    #allocation8 [shape = 'u8[16384]{0}', space=vmem, size = 0x4000, scoped, tag = 'input window, operand 2, single buffered']
    #allocation9 [shape = 'u8[16384]{0}', space=vmem, size = 0x4000, scoped, tag = 'input window, operand 4, single buffered']
    #allocation10 [shape = 's32[1]{0}', space=sflag, size = 0x4, scoped, tag = 'scoped memory for tpu_custom_call.1']
    #allocation11 [shape = 'u8[16384]{0}', space=vmem, size = 0x4000, scoped, tag = 'input window, operand 5, single buffered']
    #allocation12 [shape = 'u8[16384]{0}', space=vmem, size = 0x4000, scoped, tag = 'input window, operand 7, single buffered']
    #allocation13 [shape = 's32[1]{0}', space=sflag, size = 0x4, scoped, tag = 'scoped memory for tpu_custom_call.1']
    #allocation14 [shape = 'u8[8192]{0}', space=vmem, size = 0x2000, scoped, tag = 'output window, operand 0, single buffered']
    #allocation15 [shape = 'u8[2048]{0}', space=vmem, size = 0x800, scoped, tag = 'output window, operand 1, single buffered']
    #allocation16 [shape = 's32[1]{0}', space=sflag, size = 0x4, scoped, tag = 'scoped memory for tpu_custom_call.1']
    #allocation17 [shape = 'u8[2048]{0}', space=vmem, size = 0x800, scoped, tag = 'output window, operand 2, single buffered']
    %19 = vsyncpa [#allocation4], 0
    %20 = vsyncpa [#allocation7], 0
    %21 = vsyncpa [#allocation10], 0
    %22 = vsyncpa [#allocation13], 0
    %23 = vsyncpa [#allocation5], 0
    %24 = vsyncpa [#allocation16], 0
    // Predicated region
    $region2: #{tpu_custom_call.1} parent=1 // pred_check
      _
    $region3: #{tpu_custom_call.1} parent=1 // pred_check_branch
      %26 = sbr.rel (0) target = $region5
    $region4: #{tpu_custom_call.1} parent=1 // pred_region
      %s28 = ssub.s32 256, 256
      %29 = vsyncadd [#allocation4], %s28
      %s30 = sshll.u32 [#allocation3], 4
      %s31 = int_to_ptr.vmem [resolvable:$true] %s30
      %36 = dma.hbm_to_vmem [thread:$0]  %s0, 256, %s31, [#allocation4], 128, 128, 8
    $region5: #{tpu_custom_call.1} parent=1 // pred_fallthru
      _
    // Predicated region
    $region6: #{tpu_custom_call.1} parent=1 // pred_check
      _
    $region7: #{tpu_custom_call.1} parent=1 // pred_check_branch
      %38 = sbr.rel (0) target = $region9
    $region8: #{tpu_custom_call.1} parent=1 // pred_region
      %s40 = ssub.s32 512, 512
      %41 = vsyncadd [#allocation7], %s40
      %s42 = sshll.u32 [#allocation6], 4
      %s43 = int_to_ptr.vmem [resolvable:$true] %s42
      %48 = dma.hbm_to_vmem [thread:$0]  %s1, 512, %s43, [#allocation7], 128, 128, 8
    $region9: #{tpu_custom_call.1} parent=1 // pred_fallthru
      _
    // Predicated region
    $region10: #{tpu_custom_call.1} parent=1 // pred_check
      _
    $region11: #{tpu_custom_call.1} parent=1 // pred_check_branch
      %50 = sbr.rel (0) target = $region13
    $region12: #{tpu_custom_call.1} parent=1 // pred_region
      %s52 = ssub.s32 512, 512
      %53 = vsyncadd [#allocation7], %s52
      %s54 = sshll.u32 [#allocation8], 4
      %s55 = int_to_ptr.vmem [resolvable:$true] %s54
      %60 = dma.hbm_to_vmem [thread:$0]  %s2, 512, %s55, [#allocation7], 128, 128, 8
    $region13: #{tpu_custom_call.1} parent=1 // pred_fallthru
      _
    // Predicated region
    $region14: #{tpu_custom_call.1} parent=1 // pred_check
      _
    $region15: #{tpu_custom_call.1} parent=1 // pred_check_branch
      %62 = sbr.rel (0) target = $region17
    $region16: #{tpu_custom_call.1} parent=1 // pred_region
      _
    $region17: #{tpu_custom_call.1} parent=1 // pred_fallthru
      _
    // Predicated region
    $region18: #{tpu_custom_call.1} parent=1 // pred_check
      _
    $region19: #{tpu_custom_call.1} parent=1 // pred_check_branch
      %64 = sbr.rel (0) target = $region21
    $region20: #{tpu_custom_call.1} parent=1 // pred_region
      %s66 = ssub.s32 512, 512
      %67 = vsyncadd [#allocation10], %s66
      %s68 = sshll.u32 [#allocation9], 4
      %s69 = int_to_ptr.vmem [resolvable:$true] %s68
      %74 = dma.hbm_to_vmem [thread:$0]  %s4, 512, %s69, [#allocation10], 128, 128, 8
    $region21: #{tpu_custom_call.1} parent=1 // pred_fallthru
      _
    // Predicated region
    $region22: #{tpu_custom_call.1} parent=1 // pred_check
      _
    $region23: #{tpu_custom_call.1} parent=1 // pred_check_branch
      %76 = sbr.rel (0) target = $region25
    $region24: #{tpu_custom_call.1} parent=1 // pred_region
      %s78 = ssub.s32 512, 512
      %79 = vsyncadd [#allocation10], %s78
      %s80 = sshll.u32 [#allocation11], 4
      %s81 = int_to_ptr.vmem [resolvable:$true] %s80
      %86 = dma.hbm_to_vmem [thread:$0]  %s5, 512, %s81, [#allocation10], 128, 128, 8
    $region25: #{tpu_custom_call.1} parent=1 // pred_fallthru
      _
    // Predicated region
    $region26: #{tpu_custom_call.1} parent=1 // pred_check
      _
    $region27: #{tpu_custom_call.1} parent=1 // pred_check_branch
      %88 = sbr.rel (0) target = $region29
    $region28: #{tpu_custom_call.1} parent=1 // pred_region
      _
    $region29: #{tpu_custom_call.1} parent=1 // pred_fallthru
      _
    // Predicated region
    $region30: #{tpu_custom_call.1} parent=1 // pred_check
      _
    $region31: #{tpu_custom_call.1} parent=1 // pred_check_branch
      %90 = sbr.rel (0) target = $region33
    $region32: #{tpu_custom_call.1} parent=1 // pred_region
      %s92 = ssub.s32 512, 512
      %93 = vsyncadd [#allocation13], %s92
      %s94 = sshll.u32 [#allocation12], 4
      %s95 = int_to_ptr.vmem [resolvable:$true] %s94
      %100 = dma.hbm_to_vmem [thread:$0]  %s7, 512, %s95, [#allocation13], 128, 128, 8
    $region33: #{tpu_custom_call.1} parent=1 // pred_fallthru
      _
    // Predicated region
    $region34: #{tpu_custom_call.1} parent=1 // pred_check
      _
    $region35: #{tpu_custom_call.1} parent=1 // pred_check_branch
      %102 = sbr.rel (0) target = $region37
    $region36: #{tpu_custom_call.1} parent=1 // pred_region
      _
    $region37: #{tpu_custom_call.1} parent=1 // pred_fallthru
      _
    // Predicated region
    $region38: #{tpu_custom_call.1} parent=1 // pred_check
      _
    $region39: #{tpu_custom_call.1} parent=1 // pred_check_branch
      %104 = sbr.rel (0) target = $region41
    $region40: #{tpu_custom_call.1} parent=1 // pred_region
      _
    $region41: #{tpu_custom_call.1} parent=1 // pred_fallthru
      _
    // Predicated region
    $region42: #{tpu_custom_call.1} parent=1 // pred_check
      _
    $region43: #{tpu_custom_call.1} parent=1 // pred_check_branch
      %106 = sbr.rel (0) target = $region45
    $region44: #{tpu_custom_call.1} parent=1 // pred_region
      _
    $region45: #{tpu_custom_call.1} parent=1 // pred_fallthru
      _
    // Predicated region
    $region46: #{tpu_custom_call.1} parent=1 // pred_check
      _
    $region47: #{tpu_custom_call.1} parent=1 // pred_check_branch
      %108 = sbr.rel (0) target = $region49
    $region48: #{tpu_custom_call.1} parent=1 // pred_region
      %109 = dma.done [#allocation4], 256
    $region49: #{tpu_custom_call.1} parent=1 // pred_fallthru
      _
    // Predicated region
    $region50: #{tpu_custom_call.1} parent=1 // pred_check
      _
    $region51: #{tpu_custom_call.1} parent=1 // pred_check_branch
      %111 = sbr.rel (0) target = $region53
    $region52: #{tpu_custom_call.1} parent=1 // pred_region
      %112 = dma.done [#allocation7], 512
    $region53: #{tpu_custom_call.1} parent=1 // pred_fallthru
      _
    // Predicated region
    $region54: #{tpu_custom_call.1} parent=1 // pred_check
      _
    $region55: #{tpu_custom_call.1} parent=1 // pred_check_branch
      %114 = sbr.rel (0) target = $region57
    $region56: #{tpu_custom_call.1} parent=1 // pred_region
      %115 = dma.done [#allocation7], 512
    $region57: #{tpu_custom_call.1} parent=1 // pred_fallthru
      _
    // Predicated region
    $region58: #{tpu_custom_call.1} parent=1 // pred_check
      _
    $region59: #{tpu_custom_call.1} parent=1 // pred_check_branch
      %117 = sbr.rel (0) target = $region61
    $region60: #{tpu_custom_call.1} parent=1 // pred_region
      %118 = dma.done [#allocation10], 512
    $region61: #{tpu_custom_call.1} parent=1 // pred_fallthru
      _
    // Predicated region
    $region62: #{tpu_custom_call.1} parent=1 // pred_check
      _
    $region63: #{tpu_custom_call.1} parent=1 // pred_check_branch
      %120 = sbr.rel (0) target = $region65
    $region64: #{tpu_custom_call.1} parent=1 // pred_region
      %121 = dma.done [#allocation10], 512
    $region65: #{tpu_custom_call.1} parent=1 // pred_fallthru
      _
    // Predicated region
    $region66: #{tpu_custom_call.1} parent=1 // pred_check
      _
    $region67: #{tpu_custom_call.1} parent=1 // pred_check_branch
      %123 = sbr.rel (0) target = $region69
    $region68: #{tpu_custom_call.1} parent=1 // pred_region
      %124 = dma.done [#allocation13], 512
    $region69: #{tpu_custom_call.1} parent=1 // pred_fallthru
      _
    %v125 = vld [vmem:[#allocation3] sm:$0xff]
    %v126 = vld [vmem:[#allocation3 + $0x8] sm:$0xff]
    %v127 = vld [vmem:[#allocation6] sm:$0xff]
    %v128 = vld [vmem:[#allocation6 + $0x8] sm:$0xff]
    %v129 = vld [vmem:[#allocation6 + $0x10] sm:$0xff]
    %v130 = vld [vmem:[#allocation6 + $0x18] sm:$0xff]
    %v131 = vld [vmem:[#allocation8] sm:$0xff]
    %v132 = vld [vmem:[#allocation8 + $0x8] sm:$0xff]
    %v133 = vld [vmem:[#allocation8 + $0x10] sm:$0xff]
    %v134 = vld [vmem:[#allocation8 + $0x18] sm:$0xff]
    %v135 = vld [vmem:[%s3] sm:$0x1]
    %v137 = vlaneseq
    %v138 = vshrl.u32 %v137, 7
    %v139 = vsub.s32 0, %v138
    %v140 = vrot.slane %v135, %v139
    %vm142 = vcmask 261120
    %v144 = vsel %vm142, %v125, 0
    %v147 = vsel %vm142, %v126, 0
    %149 = vmatprep.subr.mxu0 0.0
    %150 = vmatpush1.msra.mxu0 0.0
    %151 = vmatprep.subr.mxu0 0.0
    %152 = vmatpush1.msra.mxu0 0.0
    %153 = vmatprep.subr.mxu0 0.0
    %154 = vmatpush1.msra.mxu0 0.0
    %155 = vmatprep.subr.mxu0 0.0
    %156 = vmatpush1.msra.mxu0 0.0
    %157 = vmatprep.subr.mxu0 0.0
    %158 = vmatpush1.msra.mxu0 0.0
    %159 = vmatprep.subr.mxu0 0.0
    %160 = vmatpush1.msra.mxu0 0.0
    %161 = vmatprep.subr.mxu0 0.0
    %162 = vmatpush1.msra.mxu0 0.0
    %163 = vmatprep.subr.mxu0 0.0
    %164 = vmatpush1.msra.mxu0 0.0
    %165 = vmatprep.subr.mxu0 0.0
    %166 = vmatpush1.msra.mxu0 0.0
    %167 = vmatprep.subr.mxu0 0.0
    %168 = vmatpush1.msra.mxu0 0.0
    %169 = vmatprep.subr.mxu0 0.0
    %170 = vmatpush1.msra.mxu0 0.0
    %171 = vmatprep.subr.mxu0 0.0
    %172 = vmatpush1.msra.mxu0 0.0
    %173 = vmatprep.subr.mxu0 0.0
    %174 = vmatpush1.msra.mxu0 %v130
    %175 = vmatprep.subr.mxu0 0.0
    %176 = vmatpush1.msra.mxu0 %v129
    %177 = vmatprep.subr.mxu0 0.0
    %178 = vmatpush1.msra.mxu0 %v128
    %179 = vmatprep.subr.mxu0 0.0
    %180 = vmatpush1.msra.mxu0 %v127
    %181 = vmatprep.subr.mxu0 0.0
    %182 = vmatpush2.msra.mxu0 0.0
    %183 = vmatprep.subr.mxu0 0.0
    %184 = vmatpush2.msra.mxu0 0.0
    %185 = vmatprep.subr.mxu0 0.0
    %186 = vmatpush2.msra.mxu0 0.0
    %187 = vmatprep.subr.mxu0 0.0
    %188 = vmatpush2.msra.mxu0 0.0
    %189 = vmatprep.subr.mxu0 0.0
    %190 = vmatpush2.msra.mxu0 0.0
    %191 = vmatprep.subr.mxu0 0.0
    %192 = vmatpush2.msra.mxu0 0.0
    %193 = vmatprep.subr.mxu0 0.0
    %194 = vmatpush2.msra.mxu0 0.0
    %195 = vmatprep.subr.mxu0 0.0
    %196 = vmatpush2.msra.mxu0 0.0
    %197 = vmatprep.subr.mxu0 0.0
    %198 = vmatpush2.msra.mxu0 0.0
    %199 = vmatprep.subr.mxu0 0.0
    %200 = vmatpush2.msra.mxu0 0.0
    %201 = vmatprep.subr.mxu0 0.0
    %202 = vmatpush2.msra.mxu0 0.0
    %203 = vmatprep.subr.mxu0 0.0
    %204 = vmatpush2.msra.mxu0 0.0
    %205 = vmatprep.subr.mxu0 0.0
    %206 = vmatpush2.msra.mxu0 0.0
    %207 = vmatprep.subr.mxu0 0.0
    %208 = vmatpush2.msra.mxu0 0.0
    %209 = vmatprep.subr.mxu0 0.0
    %210 = vmatpush2.msra.mxu0 0.0
    %211 = vmatprep.subr.mxu0 0.0
    %212 = vmatpush2.msra.mxu0 0.0
    %213 = vmatprep.mubr.f32.mxu0 0.0
    %214 = vmatmul.mubr.f32.gmra.mxu0 %v144
    %v215 = vpop.f32.mrf.mxu0
    %v216 = vadd.f32 %v140, %v215
    %v217 = vpop.f32.mrf.mxu0
    %218 = vmatprep.mubr.f32.mxu0 0.0
    %219 = vmatmul.mubr.f32.gmra.mxu0 %v147
    %v220 = vpop.f32.mrf.mxu0
    %v221 = vadd.f32 %v140, %v220
    %v222 = vpop.f32.mrf.mxu0
    %223 = vdwg.mxu0
    %v224 = vld [vmem:[%s9] sm:$0x3]
    %v225 = vld [vmem:[%s10] sm:$0x3]
    %v227 = vsel %vm142, %v224, 0
    %229 = vmatprep.subr.mxu0 0.0
    %230 = vmatpush1.msra.mxu0 0.0
    %231 = vmatprep.subr.mxu0 0.0
    %232 = vmatpush1.msra.mxu0 0.0
    %233 = vmatprep.subr.mxu0 0.0
    %234 = vmatpush1.msra.mxu0 0.0
    %235 = vmatprep.subr.mxu0 0.0
    %236 = vmatpush1.msra.mxu0 0.0
    %237 = vmatprep.subr.mxu0 0.0
    %238 = vmatpush1.msra.mxu0 0.0
    %239 = vmatprep.subr.mxu0 0.0
    %240 = vmatpush1.msra.mxu0 0.0
    %241 = vmatprep.subr.mxu0 0.0
    %242 = vmatpush1.msra.mxu0 0.0
    %243 = vmatprep.subr.mxu0 0.0
    %244 = vmatpush1.msra.mxu0 0.0
    %245 = vmatprep.subr.mxu0 0.0
    %246 = vmatpush1.msra.mxu0 0.0
    %247 = vmatprep.subr.mxu0 0.0
    %248 = vmatpush1.msra.mxu0 0.0
    %249 = vmatprep.subr.mxu0 0.0
    %250 = vmatpush1.msra.mxu0 0.0
    %251 = vmatprep.subr.mxu0 0.0
    %252 = vmatpush1.msra.mxu0 0.0
    %253 = vmatprep.subr.mxu0 0.0
    %254 = vmatpush1.msra.mxu0 %v134
    %255 = vmatprep.subr.mxu0 0.0
    %256 = vmatpush1.msra.mxu0 %v133
    %257 = vmatprep.subr.mxu0 0.0
    %258 = vmatpush1.msra.mxu0 %v132
    %259 = vmatprep.subr.mxu0 0.0
    %260 = vmatpush1.msra.mxu0 %v131
    %261 = vmatprep.subr.mxu0 0.0
    %262 = vmatpush2.msra.mxu0 0.0
    %263 = vmatprep.subr.mxu0 0.0
    %264 = vmatpush2.msra.mxu0 0.0
    %265 = vmatprep.subr.mxu0 0.0
    %266 = vmatpush2.msra.mxu0 0.0
    %267 = vmatprep.subr.mxu0 0.0
    %268 = vmatpush2.msra.mxu0 0.0
    %269 = vmatprep.subr.mxu0 0.0
    %270 = vmatpush2.msra.mxu0 0.0
    %271 = vmatprep.subr.mxu0 0.0
    %272 = vmatpush2.msra.mxu0 0.0
    %273 = vmatprep.subr.mxu0 0.0
    %274 = vmatpush2.msra.mxu0 0.0
    %275 = vmatprep.subr.mxu0 0.0
    %276 = vmatpush2.msra.mxu0 0.0
    %277 = vmatprep.subr.mxu0 0.0
    %278 = vmatpush2.msra.mxu0 0.0
    %279 = vmatprep.subr.mxu0 0.0
    %280 = vmatpush2.msra.mxu0 0.0
    %281 = vmatprep.subr.mxu0 0.0
    %282 = vmatpush2.msra.mxu0 0.0
    %283 = vmatprep.subr.mxu0 0.0
    %284 = vmatpush2.msra.mxu0 0.0
    %285 = vmatprep.subr.mxu0 0.0
    %286 = vmatpush2.msra.mxu0 0.0
    %287 = vmatprep.subr.mxu0 0.0
    %288 = vmatpush2.msra.mxu0 0.0
    %289 = vmatprep.subr.mxu0 0.0
    %290 = vmatpush2.msra.mxu0 0.0
    %291 = vmatprep.subr.mxu0 0.0
    %292 = vmatpush2.msra.mxu0 0.0
    %293 = vmatprep.mubr.f32.mxu0 0.0
    %294 = vmatmul.mubr.f32.gmra.mxu0 %v227
    %v295 = vpop.f32.mrf.mxu0
    %v296 = vadd.f32 0.0, %v295
    %v297 = vpop.f32.mrf.mxu0
    %298 = vdwg.mxu0
    %v299 = vadd.f32 %v216, %v296
    %v300 = vxor.u32 %v299, 2147483648
    %v301 = vmul.f32 %v300, 1.442695
    %v302 = vpow.pop %v301
    %v303 = vadd.f32 %v302, 1.0
    %v304 = vrcp.pop %v303
    %v305 = vmul.f32 1.0, %v304
    %v306 = vtanh.pop %v299
    %308 = vrot.lane.b32.xlu0 %v225, 32
    %v309 = vpop.permute.xlu0 %308
    %v311 = vmul.f32 %v305, %v309
    %313 = vrot.lane.b32.xlu0 %v306, 64
    %v314 = vpop.permute.xlu0 %313
    %v316 = vmul.f32 %v305, %v314
    %318 = vrot.lane.b32.xlu0 %v316, 32
    %v319 = vpop.permute.xlu0 %318
    %v321 = vadd.f32 %v311, %v319
    %v322 = vtanh.pop %v321
    %324 = vrot.lane.b32.xlu0 %v322, 64
    %v325 = vpop.permute.xlu0 %324
    %v327 = vmul.f32 %v305, %v325
    %329 = vrot.lane.b32.xlu0 %v327, 32
    %v330 = vpop.permute.xlu0 %329
    %vm332 = vcmask 254976
    %333 = vst.msk [vmem:[#allocation2] sm:$0x3] %vm332, %v330
    %v334 = vsel %vm142, %v330, 0
    %336 = vmatprep.subr.mxu0 0.0
    %337 = vmatpush1.msra.mxu0 0.0
    %338 = vmatprep.subr.mxu0 0.0
    %339 = vmatpush1.msra.mxu0 0.0
    %340 = vmatprep.subr.mxu0 0.0
    %341 = vmatpush1.msra.mxu0 0.0
    %342 = vmatprep.subr.mxu0 0.0
    %343 = vmatpush1.msra.mxu0 0.0
    %344 = vmatprep.subr.mxu0 0.0
    %345 = vmatpush1.msra.mxu0 0.0
    %346 = vmatprep.subr.mxu0 0.0
    %347 = vmatpush1.msra.mxu0 0.0
    %348 = vmatprep.subr.mxu0 0.0
    %349 = vmatpush1.msra.mxu0 0.0
    %350 = vmatprep.subr.mxu0 0.0
    %351 = vmatpush1.msra.mxu0 0.0
    %352 = vmatprep.subr.mxu0 0.0
    %353 = vmatpush1.msra.mxu0 0.0
    %354 = vmatprep.subr.mxu0 0.0
    %355 = vmatpush1.msra.mxu0 0.0
    %356 = vmatprep.subr.mxu0 0.0
    %357 = vmatpush1.msra.mxu0 0.0
    %358 = vmatprep.subr.mxu0 0.0
    %359 = vmatpush1.msra.mxu0 0.0
    %360 = vmatprep.subr.mxu0 0.0
    %361 = vmatpush1.msra.mxu0 %v134
    %362 = vmatprep.subr.mxu0 0.0
    %363 = vmatpush1.msra.mxu0 %v133
    %364 = vmatprep.subr.mxu0 0.0
    %365 = vmatpush1.msra.mxu0 %v132
    %366 = vmatprep.subr.mxu0 0.0
    %367 = vmatpush1.msra.mxu0 %v131
    %368 = vmatprep.subr.mxu0 0.0
    %369 = vmatpush2.msra.mxu0 0.0
    %370 = vmatprep.subr.mxu0 0.0
    %371 = vmatpush2.msra.mxu0 0.0
    %372 = vmatprep.subr.mxu0 0.0
    %373 = vmatpush2.msra.mxu0 0.0
    %374 = vmatprep.subr.mxu0 0.0
    %375 = vmatpush2.msra.mxu0 0.0
    %376 = vmatprep.subr.mxu0 0.0
    %377 = vmatpush2.msra.mxu0 0.0
    %378 = vmatprep.subr.mxu0 0.0
    %379 = vmatpush2.msra.mxu0 0.0
    %380 = vmatprep.subr.mxu0 0.0
    %381 = vmatpush2.msra.mxu0 0.0
    %382 = vmatprep.subr.mxu0 0.0
    %383 = vmatpush2.msra.mxu0 0.0
    %384 = vmatprep.subr.mxu0 0.0
    %385 = vmatpush2.msra.mxu0 0.0
    %386 = vmatprep.subr.mxu0 0.0
    %387 = vmatpush2.msra.mxu0 0.0
    %388 = vmatprep.subr.mxu0 0.0
    %389 = vmatpush2.msra.mxu0 0.0
    %390 = vmatprep.subr.mxu0 0.0
    %391 = vmatpush2.msra.mxu0 0.0
    %392 = vmatprep.subr.mxu0 0.0
    %393 = vmatpush2.msra.mxu0 0.0
    %394 = vmatprep.subr.mxu0 0.0
    %395 = vmatpush2.msra.mxu0 0.0
    %396 = vmatprep.subr.mxu0 0.0
    %397 = vmatpush2.msra.mxu0 0.0
    %398 = vmatprep.subr.mxu0 0.0
    %399 = vmatpush2.msra.mxu0 0.0
    %400 = vmatprep.mubr.f32.mxu0 0.0
    %401 = vmatmul.mubr.f32.gmra.mxu0 %v334
    %v402 = vpop.f32.mrf.mxu0
    %v403 = vadd.f32 0.0, %v402
    %v404 = vpop.f32.mrf.mxu0
    %405 = vdwg.mxu0
    %v407 = vrot.slane %v403, 6
    %v409 = vadd.f32 %v216, %v407
    %v410 = vxor.u32 %v409, 2147483648
    %v411 = vmul.f32 %v410, 1.442695
    %v412 = vpow.pop %v411
    %v413 = vadd.f32 %v412, 1.0
    %v414 = vrcp.pop %v413
    %v415 = vmul.f32 1.0, %v414
    %v416 = vtanh.pop %v409
    %v418 = vrot.slane %v321, 6
    %v420 = vmul.f32 %v415, %v418
    %422 = vrot.lane.b32.xlu0 %v416, 64
    %v423 = vpop.permute.xlu0 %422
    %v425 = vmul.f32 %v415, %v423
    %427 = vrot.lane.b32.xlu0 %v425, 32
    %v428 = vpop.permute.xlu0 %427
    %v430 = vadd.f32 %v420, %v428
    %v431 = vtanh.pop %v430
    %433 = vrot.lane.b32.xlu0 %v431, 64
    %v434 = vpop.permute.xlu0 %433
    %v436 = vmul.f32 %v415, %v434
    %438 = vrot.lane.b32.xlu0 %v436, 32
    %v439 = vpop.permute.xlu0 %438
    %vm441 = vcmask 257026
    %442 = vst.msk [vmem:[#allocation2] sm:$0xc] %vm441, %v439
    %v443 = vrot.slane %v436, 2
    %444 = vrot.lane.b32.xlu0 %v443, 32
    %v445 = vpop.permute.xlu0 %444
    %v446 = vsel %vm142, %v445, 0
    %448 = vmatprep.subr.mxu0 0.0
    %449 = vmatpush1.msra.mxu0 0.0
    %450 = vmatprep.subr.mxu0 0.0
    %451 = vmatpush1.msra.mxu0 0.0
    %452 = vmatprep.subr.mxu0 0.0
    %453 = vmatpush1.msra.mxu0 0.0
    %454 = vmatprep.subr.mxu0 0.0
    %455 = vmatpush1.msra.mxu0 0.0
    %456 = vmatprep.subr.mxu0 0.0
    %457 = vmatpush1.msra.mxu0 0.0
    %458 = vmatprep.subr.mxu0 0.0
    %459 = vmatpush1.msra.mxu0 0.0
    %460 = vmatprep.subr.mxu0 0.0
    %461 = vmatpush1.msra.mxu0 0.0
    %462 = vmatprep.subr.mxu0 0.0
    %463 = vmatpush1.msra.mxu0 0.0
    %464 = vmatprep.subr.mxu0 0.0
    %465 = vmatpush1.msra.mxu0 0.0
    %466 = vmatprep.subr.mxu0 0.0
    %467 = vmatpush1.msra.mxu0 0.0
    %468 = vmatprep.subr.mxu0 0.0
    %469 = vmatpush1.msra.mxu0 0.0
    %470 = vmatprep.subr.mxu0 0.0
    %471 = vmatpush1.msra.mxu0 0.0
    %472 = vmatprep.subr.mxu0 0.0
    %473 = vmatpush1.msra.mxu0 %v134
    %474 = vmatprep.subr.mxu0 0.0
    %475 = vmatpush1.msra.mxu0 %v133
    %476 = vmatprep.subr.mxu0 0.0
    %477 = vmatpush1.msra.mxu0 %v132
    %478 = vmatprep.subr.mxu0 0.0
    %479 = vmatpush1.msra.mxu0 %v131
    %480 = vmatprep.subr.mxu0 0.0
    %481 = vmatpush2.msra.mxu0 0.0
    %482 = vmatprep.subr.mxu0 0.0
    %483 = vmatpush2.msra.mxu0 0.0
    %484 = vmatprep.subr.mxu0 0.0
    %485 = vmatpush2.msra.mxu0 0.0
    %486 = vmatprep.subr.mxu0 0.0
    %487 = vmatpush2.msra.mxu0 0.0
    %488 = vmatprep.subr.mxu0 0.0
    %489 = vmatpush2.msra.mxu0 0.0
    %490 = vmatprep.subr.mxu0 0.0
    %491 = vmatpush2.msra.mxu0 0.0
    %492 = vmatprep.subr.mxu0 0.0
    %493 = vmatpush2.msra.mxu0 0.0
    %494 = vmatprep.subr.mxu0 0.0
    %495 = vmatpush2.msra.mxu0 0.0
    %496 = vmatprep.subr.mxu0 0.0
    %497 = vmatpush2.msra.mxu0 0.0
    %498 = vmatprep.subr.mxu0 0.0
    %499 = vmatpush2.msra.mxu0 0.0
    %500 = vmatprep.subr.mxu0 0.0
    %501 = vmatpush2.msra.mxu0 0.0
    %502 = vmatprep.subr.mxu0 0.0
    %503 = vmatpush2.msra.mxu0 0.0
    %504 = vmatprep.subr.mxu0 0.0
    %505 = vmatpush2.msra.mxu0 0.0
    %506 = vmatprep.subr.mxu0 0.0
    %507 = vmatpush2.msra.mxu0 0.0
    %508 = vmatprep.subr.mxu0 0.0
    %509 = vmatpush2.msra.mxu0 0.0
    %510 = vmatprep.subr.mxu0 0.0
    %511 = vmatpush2.msra.mxu0 0.0
    %512 = vmatprep.mubr.f32.mxu0 0.0
    %513 = vmatmul.mubr.f32.gmra.mxu0 %v446
    %v514 = vpop.f32.mrf.mxu0
    %v515 = vadd.f32 0.0, %v514
    %v516 = vpop.f32.mrf.mxu0
    %517 = vdwg.mxu0
    %v519 = vrot.slane %v515, 4
    %v521 = vadd.f32 %v216, %v519
    %v522 = vxor.u32 %v521, 2147483648
    %v523 = vmul.f32 %v522, 1.442695
    %v524 = vpow.pop %v523
    %v525 = vadd.f32 %v524, 1.0
    %v526 = vrcp.pop %v525
    %v527 = vmul.f32 1.0, %v526
    %v528 = vtanh.pop %v521
    %v530 = vrot.slane %v430, 6
    %v532 = vmul.f32 %v527, %v530
    %534 = vrot.lane.b32.xlu0 %v528, 64
    %v535 = vpop.permute.xlu0 %534
    %v537 = vmul.f32 %v527, %v535
    %539 = vrot.lane.b32.xlu0 %v537, 32
    %v540 = vpop.permute.xlu0 %539
    %v542 = vadd.f32 %v532, %v540
    %v543 = vtanh.pop %v542
    %545 = vrot.lane.b32.xlu0 %v543, 64
    %v546 = vpop.permute.xlu0 %545
    %v548 = vmul.f32 %v527, %v546
    %550 = vrot.lane.b32.xlu0 %v548, 32
    %v551 = vpop.permute.xlu0 %550
    %vm553 = vcmask 259076
    %554 = vst.msk [vmem:[#allocation2] sm:$0x30] %vm553, %v551
    %v555 = vrot.slane %v548, 4
    %556 = vrot.lane.b32.xlu0 %v555, 32
    %v557 = vpop.permute.xlu0 %556
    %v558 = vsel %vm142, %v557, 0
    %560 = vmatprep.subr.mxu0 0.0
    %561 = vmatpush1.msra.mxu0 0.0
    %562 = vmatprep.subr.mxu0 0.0
    %563 = vmatpush1.msra.mxu0 0.0
    %564 = vmatprep.subr.mxu0 0.0
    %565 = vmatpush1.msra.mxu0 0.0
    %566 = vmatprep.subr.mxu0 0.0
    %567 = vmatpush1.msra.mxu0 0.0
    %568 = vmatprep.subr.mxu0 0.0
    %569 = vmatpush1.msra.mxu0 0.0
    %570 = vmatprep.subr.mxu0 0.0
    %571 = vmatpush1.msra.mxu0 0.0
    %572 = vmatprep.subr.mxu0 0.0
    %573 = vmatpush1.msra.mxu0 0.0
    %574 = vmatprep.subr.mxu0 0.0
    %575 = vmatpush1.msra.mxu0 0.0
    %576 = vmatprep.subr.mxu0 0.0
    %577 = vmatpush1.msra.mxu0 0.0
    %578 = vmatprep.subr.mxu0 0.0
    %579 = vmatpush1.msra.mxu0 0.0
    %580 = vmatprep.subr.mxu0 0.0
    %581 = vmatpush1.msra.mxu0 0.0
    %582 = vmatprep.subr.mxu0 0.0
    %583 = vmatpush1.msra.mxu0 0.0
    %584 = vmatprep.subr.mxu0 0.0
    %585 = vmatpush1.msra.mxu0 %v134
    %586 = vmatprep.subr.mxu0 0.0
    %587 = vmatpush1.msra.mxu0 %v133
    %588 = vmatprep.subr.mxu0 0.0
    %589 = vmatpush1.msra.mxu0 %v132
    %590 = vmatprep.subr.mxu0 0.0
    %591 = vmatpush1.msra.mxu0 %v131
    %592 = vmatprep.subr.mxu0 0.0
    %593 = vmatpush2.msra.mxu0 0.0
    %594 = vmatprep.subr.mxu0 0.0
    %595 = vmatpush2.msra.mxu0 0.0
    %596 = vmatprep.subr.mxu0 0.0
    %597 = vmatpush2.msra.mxu0 0.0
    %598 = vmatprep.subr.mxu0 0.0
    %599 = vmatpush2.msra.mxu0 0.0
    %600 = vmatprep.subr.mxu0 0.0
    %601 = vmatpush2.msra.mxu0 0.0
    %602 = vmatprep.subr.mxu0 0.0
    %603 = vmatpush2.msra.mxu0 0.0
    %604 = vmatprep.subr.mxu0 0.0
    %605 = vmatpush2.msra.mxu0 0.0
    %606 = vmatprep.subr.mxu0 0.0
    %607 = vmatpush2.msra.mxu0 0.0
    %608 = vmatprep.subr.mxu0 0.0
    %609 = vmatpush2.msra.mxu0 0.0
    %610 = vmatprep.subr.mxu0 0.0
    %611 = vmatpush2.msra.mxu0 0.0
    %612 = vmatprep.subr.mxu0 0.0
    %613 = vmatpush2.msra.mxu0 0.0
    %614 = vmatprep.subr.mxu0 0.0
    %615 = vmatpush2.msra.mxu0 0.0
    %616 = vmatprep.subr.mxu0 0.0
    %617 = vmatpush2.msra.mxu0 0.0
    %618 = vmatprep.subr.mxu0 0.0
    %619 = vmatpush2.msra.mxu0 0.0
    %620 = vmatprep.subr.mxu0 0.0
    %621 = vmatpush2.msra.mxu0 0.0
    %622 = vmatprep.subr.mxu0 0.0
    %623 = vmatpush2.msra.mxu0 0.0
    %624 = vmatprep.mubr.f32.mxu0 0.0
    %625 = vmatmul.mubr.f32.gmra.mxu0 %v558
    %v626 = vpop.f32.mrf.mxu0
    %v627 = vadd.f32 0.0, %v626
    %v628 = vpop.f32.mrf.mxu0
    %629 = vdwg.mxu0
    %v631 = vrot.slane %v627, 2
    %v633 = vadd.f32 %v216, %v631
    %v634 = vxor.u32 %v633, 2147483648
    %v635 = vmul.f32 %v634, 1.442695
    %v636 = vpow.pop %v635
    %v637 = vadd.f32 %v636, 1.0
    %v638 = vrcp.pop %v637
    %v639 = vmul.f32 1.0, %v638
    %v640 = vtanh.pop %v633
    %v642 = vrot.slane %v542, 6
    %v644 = vmul.f32 %v639, %v642
    %646 = vrot.lane.b32.xlu0 %v640, 64
    %v647 = vpop.permute.xlu0 %646
    %v649 = vmul.f32 %v639, %v647
    %651 = vrot.lane.b32.xlu0 %v649, 32
    %v652 = vpop.permute.xlu0 %651
    %v654 = vadd.f32 %v644, %v652
    %v655 = vtanh.pop %v654
    %657 = vrot.lane.b32.xlu0 %v655, 64
    %v658 = vpop.permute.xlu0 %657
    %v660 = vmul.f32 %v639, %v658
    %662 = vrot.lane.b32.xlu0 %v660, 32
    %v663 = vpop.permute.xlu0 %662
    %vm665 = vcmask 261126
    %666 = vst.msk [vmem:[#allocation2] sm:$0xc0] %vm665, %v663
    %v667 = vrot.slane %v660, 6
    %668 = vrot.lane.b32.xlu0 %v667, 32
    %v669 = vpop.permute.xlu0 %668
    %v670 = vsel %vm142, %v669, 0
    %672 = vmatprep.subr.mxu0 0.0
    %673 = vmatpush1.msra.mxu0 0.0
    %674 = vmatprep.subr.mxu0 0.0
    %675 = vmatpush1.msra.mxu0 0.0
    %676 = vmatprep.subr.mxu0 0.0
    %677 = vmatpush1.msra.mxu0 0.0
    %678 = vmatprep.subr.mxu0 0.0
    %679 = vmatpush1.msra.mxu0 0.0
    %680 = vmatprep.subr.mxu0 0.0
    %681 = vmatpush1.msra.mxu0 0.0
    %682 = vmatprep.subr.mxu0 0.0
    %683 = vmatpush1.msra.mxu0 0.0
    %684 = vmatprep.subr.mxu0 0.0
    %685 = vmatpush1.msra.mxu0 0.0
    %686 = vmatprep.subr.mxu0 0.0
    %687 = vmatpush1.msra.mxu0 0.0
    %688 = vmatprep.subr.mxu0 0.0
    %689 = vmatpush1.msra.mxu0 0.0
    %690 = vmatprep.subr.mxu0 0.0
    %691 = vmatpush1.msra.mxu0 0.0
    %692 = vmatprep.subr.mxu0 0.0
    %693 = vmatpush1.msra.mxu0 0.0
    %694 = vmatprep.subr.mxu0 0.0
    %695 = vmatpush1.msra.mxu0 0.0
    %696 = vmatprep.subr.mxu0 0.0
    %697 = vmatpush1.msra.mxu0 %v134
    %698 = vmatprep.subr.mxu0 0.0
    %699 = vmatpush1.msra.mxu0 %v133
    %700 = vmatprep.subr.mxu0 0.0
    %701 = vmatpush1.msra.mxu0 %v132
    %702 = vmatprep.subr.mxu0 0.0
    %703 = vmatpush1.msra.mxu0 %v131
    %704 = vmatprep.subr.mxu0 0.0
    %705 = vmatpush2.msra.mxu0 0.0
    %706 = vmatprep.subr.mxu0 0.0
    %707 = vmatpush2.msra.mxu0 0.0
    %708 = vmatprep.subr.mxu0 0.0
    %709 = vmatpush2.msra.mxu0 0.0
    %710 = vmatprep.subr.mxu0 0.0
    %711 = vmatpush2.msra.mxu0 0.0
    %712 = vmatprep.subr.mxu0 0.0
    %713 = vmatpush2.msra.mxu0 0.0
    %714 = vmatprep.subr.mxu0 0.0
    %715 = vmatpush2.msra.mxu0 0.0
    %716 = vmatprep.subr.mxu0 0.0
    %717 = vmatpush2.msra.mxu0 0.0
    %718 = vmatprep.subr.mxu0 0.0
    %719 = vmatpush2.msra.mxu0 0.0
    %720 = vmatprep.subr.mxu0 0.0
    %721 = vmatpush2.msra.mxu0 0.0
    %722 = vmatprep.subr.mxu0 0.0
    %723 = vmatpush2.msra.mxu0 0.0
    %724 = vmatprep.subr.mxu0 0.0
    %725 = vmatpush2.msra.mxu0 0.0
    %726 = vmatprep.subr.mxu0 0.0
    %727 = vmatpush2.msra.mxu0 0.0
    %728 = vmatprep.subr.mxu0 0.0
    %729 = vmatpush2.msra.mxu0 0.0
    %730 = vmatprep.subr.mxu0 0.0
    %731 = vmatpush2.msra.mxu0 0.0
    %732 = vmatprep.subr.mxu0 0.0
    %733 = vmatpush2.msra.mxu0 0.0
    %734 = vmatprep.subr.mxu0 0.0
    %735 = vmatpush2.msra.mxu0 0.0
    %736 = vmatprep.mubr.f32.mxu0 0.0
    %737 = vmatmul.mubr.f32.gmra.mxu0 %v670
    %v738 = vpop.f32.mrf.mxu0
    %v739 = vadd.f32 0.0, %v738
    %v740 = vpop.f32.mrf.mxu0
    %741 = vdwg.mxu0
    %v742 = vadd.f32 %v221, %v739
    %v743 = vxor.u32 %v742, 2147483648
    %v744 = vmul.f32 %v743, 1.442695
    %v745 = vpow.pop %v744
    %v746 = vadd.f32 %v745, 1.0
    %v747 = vrcp.pop %v746
    %v748 = vmul.f32 1.0, %v747
    %v749 = vtanh.pop %v742
    %v751 = vrot.slane %v654, 6
    %v753 = vmul.f32 %v748, %v751
    %755 = vrot.lane.b32.xlu0 %v749, 64
    %v756 = vpop.permute.xlu0 %755
    %v758 = vmul.f32 %v748, %v756
    %760 = vrot.lane.b32.xlu0 %v758, 32
    %v761 = vpop.permute.xlu0 %760
    %v763 = vadd.f32 %v753, %v761
    %v764 = vtanh.pop %v763
    %766 = vrot.lane.b32.xlu0 %v764, 64
    %v767 = vpop.permute.xlu0 %766
    %v769 = vmul.f32 %v748, %v767
    %771 = vrot.lane.b32.xlu0 %v769, 32
    %v772 = vpop.permute.xlu0 %771
    %774 = vst.msk [vmem:[#allocation2 + $0x8] sm:$0x3] %vm332, %v772
    %v775 = vsel %vm142, %v772, 0
    %777 = vmatprep.subr.mxu0 0.0
    %778 = vmatpush1.msra.mxu0 0.0
    %779 = vmatprep.subr.mxu0 0.0
    %780 = vmatpush1.msra.mxu0 0.0
    %781 = vmatprep.subr.mxu0 0.0
    %782 = vmatpush1.msra.mxu0 0.0
    %783 = vmatprep.subr.mxu0 0.0
    %784 = vmatpush1.msra.mxu0 0.0
    %785 = vmatprep.subr.mxu0 0.0
    %786 = vmatpush1.msra.mxu0 0.0
    %787 = vmatprep.subr.mxu0 0.0
    %788 = vmatpush1.msra.mxu0 0.0
    %789 = vmatprep.subr.mxu0 0.0
    %790 = vmatpush1.msra.mxu0 0.0
    %791 = vmatprep.subr.mxu0 0.0
    %792 = vmatpush1.msra.mxu0 0.0
    %793 = vmatprep.subr.mxu0 0.0
    %794 = vmatpush1.msra.mxu0 0.0
    %795 = vmatprep.subr.mxu0 0.0
    %796 = vmatpush1.msra.mxu0 0.0
    %797 = vmatprep.subr.mxu0 0.0
    %798 = vmatpush1.msra.mxu0 0.0
    %799 = vmatprep.subr.mxu0 0.0
    %800 = vmatpush1.msra.mxu0 0.0
    %801 = vmatprep.subr.mxu0 0.0
    %802 = vmatpush1.msra.mxu0 %v134
    %803 = vmatprep.subr.mxu0 0.0
    %804 = vmatpush1.msra.mxu0 %v133
    %805 = vmatprep.subr.mxu0 0.0
    %806 = vmatpush1.msra.mxu0 %v132
    %807 = vmatprep.subr.mxu0 0.0
    %808 = vmatpush1.msra.mxu0 %v131
    %809 = vmatprep.subr.mxu0 0.0
    %810 = vmatpush2.msra.mxu0 0.0
    %811 = vmatprep.subr.mxu0 0.0
    %812 = vmatpush2.msra.mxu0 0.0
    %813 = vmatprep.subr.mxu0 0.0
    %814 = vmatpush2.msra.mxu0 0.0
    %815 = vmatprep.subr.mxu0 0.0
    %816 = vmatpush2.msra.mxu0 0.0
    %817 = vmatprep.subr.mxu0 0.0
    %818 = vmatpush2.msra.mxu0 0.0
    %819 = vmatprep.subr.mxu0 0.0
    %820 = vmatpush2.msra.mxu0 0.0
    %821 = vmatprep.subr.mxu0 0.0
    %822 = vmatpush2.msra.mxu0 0.0
    %823 = vmatprep.subr.mxu0 0.0
    %824 = vmatpush2.msra.mxu0 0.0
    %825 = vmatprep.subr.mxu0 0.0
    %826 = vmatpush2.msra.mxu0 0.0
    %827 = vmatprep.subr.mxu0 0.0
    %828 = vmatpush2.msra.mxu0 0.0
    %829 = vmatprep.subr.mxu0 0.0
    %830 = vmatpush2.msra.mxu0 0.0
    %831 = vmatprep.subr.mxu0 0.0
    %832 = vmatpush2.msra.mxu0 0.0
    %833 = vmatprep.subr.mxu0 0.0
    %834 = vmatpush2.msra.mxu0 0.0
    %835 = vmatprep.subr.mxu0 0.0
    %836 = vmatpush2.msra.mxu0 0.0
    %837 = vmatprep.subr.mxu0 0.0
    %838 = vmatpush2.msra.mxu0 0.0
    %839 = vmatprep.subr.mxu0 0.0
    %840 = vmatpush2.msra.mxu0 0.0
    %841 = vmatprep.mubr.f32.mxu0 0.0
    %842 = vmatmul.mubr.f32.gmra.mxu0 %v775
    %v843 = vpop.f32.mrf.mxu0
    %v844 = vadd.f32 0.0, %v843
    %v845 = vpop.f32.mrf.mxu0
    %846 = vdwg.mxu0
    %v848 = vrot.slane %v844, 6
    %v850 = vadd.f32 %v221, %v848
    %v851 = vxor.u32 %v850, 2147483648
    %v852 = vmul.f32 %v851, 1.442695
    %v853 = vpow.pop %v852
    %v854 = vadd.f32 %v853, 1.0
    %v855 = vrcp.pop %v854
    %v856 = vmul.f32 1.0, %v855
    %v857 = vtanh.pop %v850
    %v859 = vrot.slane %v763, 6
    %v861 = vmul.f32 %v856, %v859
    %863 = vrot.lane.b32.xlu0 %v857, 64
    %v864 = vpop.permute.xlu0 %863
    %v866 = vmul.f32 %v856, %v864
    %868 = vrot.lane.b32.xlu0 %v866, 32
    %v869 = vpop.permute.xlu0 %868
    %v871 = vadd.f32 %v861, %v869
    %v872 = vtanh.pop %v871
    %874 = vrot.lane.b32.xlu0 %v872, 64
    %v875 = vpop.permute.xlu0 %874
    %v877 = vmul.f32 %v856, %v875
    %879 = vrot.lane.b32.xlu0 %v877, 32
    %v880 = vpop.permute.xlu0 %879
    %882 = vst.msk [vmem:[#allocation2 + $0x8] sm:$0xc] %vm441, %v880
    %v883 = vrot.slane %v877, 2
    %884 = vrot.lane.b32.xlu0 %v883, 32
    %v885 = vpop.permute.xlu0 %884
    %v886 = vsel %vm142, %v885, 0
    %888 = vmatprep.subr.mxu0 0.0
    %889 = vmatpush1.msra.mxu0 0.0
    %890 = vmatprep.subr.mxu0 0.0
    %891 = vmatpush1.msra.mxu0 0.0
    %892 = vmatprep.subr.mxu0 0.0
    %893 = vmatpush1.msra.mxu0 0.0
    %894 = vmatprep.subr.mxu0 0.0
    %895 = vmatpush1.msra.mxu0 0.0
    %896 = vmatprep.subr.mxu0 0.0
    %897 = vmatpush1.msra.mxu0 0.0
    %898 = vmatprep.subr.mxu0 0.0
    %899 = vmatpush1.msra.mxu0 0.0
    %900 = vmatprep.subr.mxu0 0.0
    %901 = vmatpush1.msra.mxu0 0.0
    %902 = vmatprep.subr.mxu0 0.0
    %903 = vmatpush1.msra.mxu0 0.0
    %904 = vmatprep.subr.mxu0 0.0
    %905 = vmatpush1.msra.mxu0 0.0
    %906 = vmatprep.subr.mxu0 0.0
    %907 = vmatpush1.msra.mxu0 0.0
    %908 = vmatprep.subr.mxu0 0.0
    %909 = vmatpush1.msra.mxu0 0.0
    %910 = vmatprep.subr.mxu0 0.0
    %911 = vmatpush1.msra.mxu0 0.0
    %912 = vmatprep.subr.mxu0 0.0
    %913 = vmatpush1.msra.mxu0 %v134
    %914 = vmatprep.subr.mxu0 0.0
    %915 = vmatpush1.msra.mxu0 %v133
    %916 = vmatprep.subr.mxu0 0.0
    %917 = vmatpush1.msra.mxu0 %v132
    %918 = vmatprep.subr.mxu0 0.0
    %919 = vmatpush1.msra.mxu0 %v131
    %920 = vmatprep.subr.mxu0 0.0
    %921 = vmatpush2.msra.mxu0 0.0
    %922 = vmatprep.subr.mxu0 0.0
    %923 = vmatpush2.msra.mxu0 0.0
    %924 = vmatprep.subr.mxu0 0.0
    %925 = vmatpush2.msra.mxu0 0.0
    %926 = vmatprep.subr.mxu0 0.0
    %927 = vmatpush2.msra.mxu0 0.0
    %928 = vmatprep.subr.mxu0 0.0
    %929 = vmatpush2.msra.mxu0 0.0
    %930 = vmatprep.subr.mxu0 0.0
    %931 = vmatpush2.msra.mxu0 0.0
    %932 = vmatprep.subr.mxu0 0.0
    %933 = vmatpush2.msra.mxu0 0.0
    %934 = vmatprep.subr.mxu0 0.0
    %935 = vmatpush2.msra.mxu0 0.0
    %936 = vmatprep.subr.mxu0 0.0
    %937 = vmatpush2.msra.mxu0 0.0
    %938 = vmatprep.subr.mxu0 0.0
    %939 = vmatpush2.msra.mxu0 0.0
    %940 = vmatprep.subr.mxu0 0.0
    %941 = vmatpush2.msra.mxu0 0.0
    %942 = vmatprep.subr.mxu0 0.0
    %943 = vmatpush2.msra.mxu0 0.0
    %944 = vmatprep.subr.mxu0 0.0
    %945 = vmatpush2.msra.mxu0 0.0
    %946 = vmatprep.subr.mxu0 0.0
    %947 = vmatpush2.msra.mxu0 0.0
    %948 = vmatprep.subr.mxu0 0.0
    %949 = vmatpush2.msra.mxu0 0.0
    %950 = vmatprep.subr.mxu0 0.0
    %951 = vmatpush2.msra.mxu0 0.0
    %952 = vmatprep.mubr.f32.mxu0 0.0
    %953 = vmatmul.mubr.f32.gmra.mxu0 %v886
    %v954 = vpop.f32.mrf.mxu0
    %v955 = vadd.f32 0.0, %v954
    %v956 = vpop.f32.mrf.mxu0
    %957 = vdwg.mxu0
    %v959 = vrot.slane %v955, 4
    %v961 = vadd.f32 %v221, %v959
    %v962 = vxor.u32 %v961, 2147483648
    %v963 = vmul.f32 %v962, 1.442695
    %v964 = vpow.pop %v963
    %v965 = vadd.f32 %v964, 1.0
    %v966 = vrcp.pop %v965
    %v967 = vmul.f32 1.0, %v966
    %v968 = vtanh.pop %v961
    %v970 = vrot.slane %v871, 6
    %v972 = vmul.f32 %v967, %v970
    %974 = vrot.lane.b32.xlu0 %v968, 64
    %v975 = vpop.permute.xlu0 %974
    %v977 = vmul.f32 %v967, %v975
    %979 = vrot.lane.b32.xlu0 %v977, 32
    %v980 = vpop.permute.xlu0 %979
    %v982 = vadd.f32 %v972, %v980
    %v983 = vtanh.pop %v982
    %985 = vrot.lane.b32.xlu0 %v983, 64
    %v986 = vpop.permute.xlu0 %985
    %v988 = vmul.f32 %v967, %v986
    %990 = vrot.lane.b32.xlu0 %v988, 32
    %v991 = vpop.permute.xlu0 %990
    %993 = vst.msk [vmem:[#allocation2 + $0x8] sm:$0x30] %vm553, %v991
    %v994 = vrot.slane %v988, 4
    %995 = vrot.lane.b32.xlu0 %v994, 32
    %v996 = vpop.permute.xlu0 %995
    %v997 = vsel %vm142, %v996, 0
    %999 = vmatprep.subr.mxu0 0.0
    %1000 = vmatpush1.msra.mxu0 0.0
    %1001 = vmatprep.subr.mxu0 0.0
    %1002 = vmatpush1.msra.mxu0 0.0
    %1003 = vmatprep.subr.mxu0 0.0
    %1004 = vmatpush1.msra.mxu0 0.0
    %1005 = vmatprep.subr.mxu0 0.0
    %1006 = vmatpush1.msra.mxu0 0.0
    %1007 = vmatprep.subr.mxu0 0.0
    %1008 = vmatpush1.msra.mxu0 0.0
    %1009 = vmatprep.subr.mxu0 0.0
    %1010 = vmatpush1.msra.mxu0 0.0
    %1011 = vmatprep.subr.mxu0 0.0
    %1012 = vmatpush1.msra.mxu0 0.0
    %1013 = vmatprep.subr.mxu0 0.0
    %1014 = vmatpush1.msra.mxu0 0.0
    %1015 = vmatprep.subr.mxu0 0.0
    %1016 = vmatpush1.msra.mxu0 0.0
    %1017 = vmatprep.subr.mxu0 0.0
    %1018 = vmatpush1.msra.mxu0 0.0
    %1019 = vmatprep.subr.mxu0 0.0
    %1020 = vmatpush1.msra.mxu0 0.0
    %1021 = vmatprep.subr.mxu0 0.0
    %1022 = vmatpush1.msra.mxu0 0.0
    %1023 = vmatprep.subr.mxu0 0.0
    %1024 = vmatpush1.msra.mxu0 %v134
    %1025 = vmatprep.subr.mxu0 0.0
    %1026 = vmatpush1.msra.mxu0 %v133
    %1027 = vmatprep.subr.mxu0 0.0
    %1028 = vmatpush1.msra.mxu0 %v132
    %1029 = vmatprep.subr.mxu0 0.0
    %1030 = vmatpush1.msra.mxu0 %v131
    %1031 = vmatprep.subr.mxu0 0.0
    %1032 = vmatpush2.msra.mxu0 0.0
    %1033 = vmatprep.subr.mxu0 0.0
    %1034 = vmatpush2.msra.mxu0 0.0
    %1035 = vmatprep.subr.mxu0 0.0
    %1036 = vmatpush2.msra.mxu0 0.0
    %1037 = vmatprep.subr.mxu0 0.0
    %1038 = vmatpush2.msra.mxu0 0.0
    %1039 = vmatprep.subr.mxu0 0.0
    %1040 = vmatpush2.msra.mxu0 0.0
    %1041 = vmatprep.subr.mxu0 0.0
    %1042 = vmatpush2.msra.mxu0 0.0
    %1043 = vmatprep.subr.mxu0 0.0
    %1044 = vmatpush2.msra.mxu0 0.0
    %1045 = vmatprep.subr.mxu0 0.0
    %1046 = vmatpush2.msra.mxu0 0.0
    %1047 = vmatprep.subr.mxu0 0.0
    %1048 = vmatpush2.msra.mxu0 0.0
    %1049 = vmatprep.subr.mxu0 0.0
    %1050 = vmatpush2.msra.mxu0 0.0
    %1051 = vmatprep.subr.mxu0 0.0
    %1052 = vmatpush2.msra.mxu0 0.0
    %1053 = vmatprep.subr.mxu0 0.0
    %1054 = vmatpush2.msra.mxu0 0.0
    %1055 = vmatprep.subr.mxu0 0.0
    %1056 = vmatpush2.msra.mxu0 0.0
    %1057 = vmatprep.subr.mxu0 0.0
    %1058 = vmatpush2.msra.mxu0 0.0
    %1059 = vmatprep.subr.mxu0 0.0
    %1060 = vmatpush2.msra.mxu0 0.0
    %1061 = vmatprep.subr.mxu0 0.0
    %1062 = vmatpush2.msra.mxu0 0.0
    %1063 = vmatprep.mubr.f32.mxu0 0.0
    %1064 = vmatmul.mubr.f32.gmra.mxu0 %v997
    %v1065 = vpop.f32.mrf.mxu0
    %v1066 = vadd.f32 0.0, %v1065
    %v1067 = vpop.f32.mrf.mxu0
    %1068 = vdwg.mxu0
    %v1070 = vrot.slane %v1066, 2
    %v1072 = vadd.f32 %v221, %v1070
    %v1073 = vxor.u32 %v1072, 2147483648
    %v1074 = vmul.f32 %v1073, 1.442695
    %v1075 = vpow.pop %v1074
    %v1076 = vadd.f32 %v1075, 1.0
    %v1077 = vrcp.pop %v1076
    %v1078 = vmul.f32 1.0, %v1077
    %v1079 = vtanh.pop %v1072
    %v1081 = vrot.slane %v982, 6
    %v1083 = vmul.f32 %v1078, %v1081
    %1085 = vrot.lane.b32.xlu0 %v1079, 64
    %v1086 = vpop.permute.xlu0 %1085
    %v1088 = vmul.f32 %v1078, %v1086
    %1090 = vrot.lane.b32.xlu0 %v1088, 32
    %v1091 = vpop.permute.xlu0 %1090
    %v1093 = vadd.f32 %v1083, %v1091
    %v1094 = vtanh.pop %v1093
    %1096 = vrot.lane.b32.xlu0 %v1094, 64
    %v1097 = vpop.permute.xlu0 %1096
    %v1099 = vmul.f32 %v1078, %v1097
    %1101 = vrot.lane.b32.xlu0 %v1099, 32
    %v1102 = vpop.permute.xlu0 %1101
    %1104 = vst.msk [vmem:[#allocation2 + $0x8] sm:$0xc0] %vm665, %v1102
    %1105 = vst.msk [vmem:[#allocation15 - $0x6] sm:$0xc0] %vm665, %v1102
    %1107 = vrot.lane.b32.xlu0 %v1093, 96
    %v1108 = vpop.permute.xlu0 %1107
    %1110 = vst.msk [vmem:[#allocation17 - $0x6] sm:$0xc0] %vm665, %v1108
    %v1111 = vld [vmem:[#allocation2] sm:$0xff]
    %v1112 = vld [vmem:[#allocation2 + $0x8] sm:$0xff]
    %v1113 = vld [vmem:[#allocation9] sm:$0xff]
    %v1114 = vld [vmem:[#allocation9 + $0x8] sm:$0xff]
    %v1115 = vld [vmem:[#allocation9 + $0x10] sm:$0xff]
    %v1116 = vld [vmem:[#allocation9 + $0x18] sm:$0xff]
    %v1117 = vld [vmem:[#allocation11] sm:$0xff]
    %v1118 = vld [vmem:[#allocation11 + $0x8] sm:$0xff]
    %v1119 = vld [vmem:[#allocation11 + $0x10] sm:$0xff]
    %v1120 = vld [vmem:[#allocation11 + $0x18] sm:$0xff]
    %v1121 = vld [vmem:[%s6] sm:$0x1]
    %v1123 = vlaneseq
    %v1124 = vshrl.u32 %v1123, 7
    %v1125 = vsub.s32 0, %v1124
    %v1126 = vrot.slane %v1121, %v1125
    %v1129 = vsel %vm142, %v1111, 0
    %v1132 = vsel %vm142, %v1112, 0
    %1134 = vmatprep.subr.mxu0 0.0
    %1135 = vmatpush1.msra.mxu0 0.0
    %1136 = vmatprep.subr.mxu0 0.0
    %1137 = vmatpush1.msra.mxu0 0.0
    %1138 = vmatprep.subr.mxu0 0.0
    %1139 = vmatpush1.msra.mxu0 0.0
    %1140 = vmatprep.subr.mxu0 0.0
    %1141 = vmatpush1.msra.mxu0 0.0
    %1142 = vmatprep.subr.mxu0 0.0
    %1143 = vmatpush1.msra.mxu0 0.0
    %1144 = vmatprep.subr.mxu0 0.0
    %1145 = vmatpush1.msra.mxu0 0.0
    %1146 = vmatprep.subr.mxu0 0.0
    %1147 = vmatpush1.msra.mxu0 0.0
    %1148 = vmatprep.subr.mxu0 0.0
    %1149 = vmatpush1.msra.mxu0 0.0
    %1150 = vmatprep.subr.mxu0 0.0
    %1151 = vmatpush1.msra.mxu0 0.0
    %1152 = vmatprep.subr.mxu0 0.0
    %1153 = vmatpush1.msra.mxu0 0.0
    %1154 = vmatprep.subr.mxu0 0.0
    %1155 = vmatpush1.msra.mxu0 0.0
    %1156 = vmatprep.subr.mxu0 0.0
    %1157 = vmatpush1.msra.mxu0 0.0
    %1158 = vmatprep.subr.mxu0 0.0
    %1159 = vmatpush1.msra.mxu0 %v1116
    %1160 = vmatprep.subr.mxu0 0.0
    %1161 = vmatpush1.msra.mxu0 %v1115
    %1162 = vmatprep.subr.mxu0 0.0
    %1163 = vmatpush1.msra.mxu0 %v1114
    %1164 = vmatprep.subr.mxu0 0.0
    %1165 = vmatpush1.msra.mxu0 %v1113
    %1166 = vmatprep.subr.mxu0 0.0
    %1167 = vmatpush2.msra.mxu0 0.0
    %1168 = vmatprep.subr.mxu0 0.0
    %1169 = vmatpush2.msra.mxu0 0.0
    %1170 = vmatprep.subr.mxu0 0.0
    %1171 = vmatpush2.msra.mxu0 0.0
    %1172 = vmatprep.subr.mxu0 0.0
    %1173 = vmatpush2.msra.mxu0 0.0
    %1174 = vmatprep.subr.mxu0 0.0
    %1175 = vmatpush2.msra.mxu0 0.0
    %1176 = vmatprep.subr.mxu0 0.0
    %1177 = vmatpush2.msra.mxu0 0.0
    %1178 = vmatprep.subr.mxu0 0.0
    %1179 = vmatpush2.msra.mxu0 0.0
    %1180 = vmatprep.subr.mxu0 0.0
    %1181 = vmatpush2.msra.mxu0 0.0
    %1182 = vmatprep.subr.mxu0 0.0
    %1183 = vmatpush2.msra.mxu0 0.0
    %1184 = vmatprep.subr.mxu0 0.0
    %1185 = vmatpush2.msra.mxu0 0.0
    %1186 = vmatprep.subr.mxu0 0.0
    %1187 = vmatpush2.msra.mxu0 0.0
    %1188 = vmatprep.subr.mxu0 0.0
    %1189 = vmatpush2.msra.mxu0 0.0
    %1190 = vmatprep.subr.mxu0 0.0
    %1191 = vmatpush2.msra.mxu0 0.0
    %1192 = vmatprep.subr.mxu0 0.0
    %1193 = vmatpush2.msra.mxu0 0.0
    %1194 = vmatprep.subr.mxu0 0.0
    %1195 = vmatpush2.msra.mxu0 0.0
    %1196 = vmatprep.subr.mxu0 0.0
    %1197 = vmatpush2.msra.mxu0 0.0
    %1198 = vmatprep.mubr.f32.mxu0 0.0
    %1199 = vmatmul.mubr.f32.gmra.mxu0 %v1129
    %v1200 = vpop.f32.mrf.mxu0
    %v1201 = vadd.f32 %v1126, %v1200
    %v1202 = vpop.f32.mrf.mxu0
    %1203 = vmatprep.mubr.f32.mxu0 0.0
    %1204 = vmatmul.mubr.f32.gmra.mxu0 %v1132
    %v1205 = vpop.f32.mrf.mxu0
    %v1206 = vadd.f32 %v1126, %v1205
    %v1207 = vpop.f32.mrf.mxu0
    %1208 = vdwg.mxu0
    %s1209 = scalar_lea.vmem %s9, 2
    %v1210 = vld [vmem:[%s1209] sm:$0x3]
    %s1211 = scalar_lea.vmem %s10, 2
    %v1212 = vld [vmem:[%s1211] sm:$0x3]
    %v1214 = vsel %vm142, %v1210, 0
    %1216 = vmatprep.subr.mxu0 0.0
    %1217 = vmatpush1.msra.mxu0 0.0
    %1218 = vmatprep.subr.mxu0 0.0
    %1219 = vmatpush1.msra.mxu0 0.0
    %1220 = vmatprep.subr.mxu0 0.0
    %1221 = vmatpush1.msra.mxu0 0.0
    %1222 = vmatprep.subr.mxu0 0.0
    %1223 = vmatpush1.msra.mxu0 0.0
    %1224 = vmatprep.subr.mxu0 0.0
    %1225 = vmatpush1.msra.mxu0 0.0
    %1226 = vmatprep.subr.mxu0 0.0
    %1227 = vmatpush1.msra.mxu0 0.0
    %1228 = vmatprep.subr.mxu0 0.0
    %1229 = vmatpush1.msra.mxu0 0.0
    %1230 = vmatprep.subr.mxu0 0.0
    %1231 = vmatpush1.msra.mxu0 0.0
    %1232 = vmatprep.subr.mxu0 0.0
    %1233 = vmatpush1.msra.mxu0 0.0
    %1234 = vmatprep.subr.mxu0 0.0
    %1235 = vmatpush1.msra.mxu0 0.0
    %1236 = vmatprep.subr.mxu0 0.0
    %1237 = vmatpush1.msra.mxu0 0.0
    %1238 = vmatprep.subr.mxu0 0.0
    %1239 = vmatpush1.msra.mxu0 0.0
    %1240 = vmatprep.subr.mxu0 0.0
    %1241 = vmatpush1.msra.mxu0 %v1120
    %1242 = vmatprep.subr.mxu0 0.0
    %1243 = vmatpush1.msra.mxu0 %v1119
    %1244 = vmatprep.subr.mxu0 0.0
    %1245 = vmatpush1.msra.mxu0 %v1118
    %1246 = vmatprep.subr.mxu0 0.0
    %1247 = vmatpush1.msra.mxu0 %v1117
    %1248 = vmatprep.subr.mxu0 0.0
    %1249 = vmatpush2.msra.mxu0 0.0
    %1250 = vmatprep.subr.mxu0 0.0
    %1251 = vmatpush2.msra.mxu0 0.0
    %1252 = vmatprep.subr.mxu0 0.0
    %1253 = vmatpush2.msra.mxu0 0.0
    %1254 = vmatprep.subr.mxu0 0.0
    %1255 = vmatpush2.msra.mxu0 0.0
    %1256 = vmatprep.subr.mxu0 0.0
    %1257 = vmatpush2.msra.mxu0 0.0
    %1258 = vmatprep.subr.mxu0 0.0
    %1259 = vmatpush2.msra.mxu0 0.0
    %1260 = vmatprep.subr.mxu0 0.0
    %1261 = vmatpush2.msra.mxu0 0.0
    %1262 = vmatprep.subr.mxu0 0.0
    %1263 = vmatpush2.msra.mxu0 0.0
    %1264 = vmatprep.subr.mxu0 0.0
    %1265 = vmatpush2.msra.mxu0 0.0
    %1266 = vmatprep.subr.mxu0 0.0
    %1267 = vmatpush2.msra.mxu0 0.0
    %1268 = vmatprep.subr.mxu0 0.0
    %1269 = vmatpush2.msra.mxu0 0.0
    %1270 = vmatprep.subr.mxu0 0.0
    %1271 = vmatpush2.msra.mxu0 0.0
    %1272 = vmatprep.subr.mxu0 0.0
    %1273 = vmatpush2.msra.mxu0 0.0
    %1274 = vmatprep.subr.mxu0 0.0
    %1275 = vmatpush2.msra.mxu0 0.0
    %1276 = vmatprep.subr.mxu0 0.0
    %1277 = vmatpush2.msra.mxu0 0.0
    %1278 = vmatprep.subr.mxu0 0.0
    %1279 = vmatpush2.msra.mxu0 0.0
    %1280 = vmatprep.mubr.f32.mxu0 0.0
    %1281 = vmatmul.mubr.f32.gmra.mxu0 %v1214
    %v1282 = vpop.f32.mrf.mxu0
    %v1283 = vadd.f32 0.0, %v1282
    %v1284 = vpop.f32.mrf.mxu0
    %1285 = vdwg.mxu0
    %v1286 = vadd.f32 %v1201, %v1283
    %v1287 = vxor.u32 %v1286, 2147483648
    %v1288 = vmul.f32 %v1287, 1.442695
    %v1289 = vpow.pop %v1288
    %v1290 = vadd.f32 %v1289, 1.0
    %v1291 = vrcp.pop %v1290
    %v1292 = vmul.f32 1.0, %v1291
    %v1293 = vtanh.pop %v1286
    %1295 = vrot.lane.b32.xlu0 %v1212, 32
    %v1296 = vpop.permute.xlu0 %1295
    %v1298 = vmul.f32 %v1292, %v1296
    %1300 = vrot.lane.b32.xlu0 %v1293, 64
    %v1301 = vpop.permute.xlu0 %1300
    %v1303 = vmul.f32 %v1292, %v1301
    %1305 = vrot.lane.b32.xlu0 %v1303, 32
    %v1306 = vpop.permute.xlu0 %1305
    %v1308 = vadd.f32 %v1298, %v1306
    %v1309 = vtanh.pop %v1308
    %1311 = vrot.lane.b32.xlu0 %v1309, 64
    %v1312 = vpop.permute.xlu0 %1311
    %v1314 = vmul.f32 %v1292, %v1312
    %1316 = vrot.lane.b32.xlu0 %v1314, 32
    %v1317 = vpop.permute.xlu0 %1316
    %1319 = vst.msk [vmem:[#allocation2] sm:$0x3] %vm332, %v1317
    %v1320 = vsel %vm142, %v1317, 0
    %1322 = vmatprep.subr.mxu0 0.0
    %1323 = vmatpush1.msra.mxu0 0.0
    %1324 = vmatprep.subr.mxu0 0.0
    %1325 = vmatpush1.msra.mxu0 0.0
    %1326 = vmatprep.subr.mxu0 0.0
    %1327 = vmatpush1.msra.mxu0 0.0
    %1328 = vmatprep.subr.mxu0 0.0
    %1329 = vmatpush1.msra.mxu0 0.0
    %1330 = vmatprep.subr.mxu0 0.0
    %1331 = vmatpush1.msra.mxu0 0.0
    %1332 = vmatprep.subr.mxu0 0.0
    %1333 = vmatpush1.msra.mxu0 0.0
    %1334 = vmatprep.subr.mxu0 0.0
    %1335 = vmatpush1.msra.mxu0 0.0
    %1336 = vmatprep.subr.mxu0 0.0
    %1337 = vmatpush1.msra.mxu0 0.0
    %1338 = vmatprep.subr.mxu0 0.0
    %1339 = vmatpush1.msra.mxu0 0.0
    %1340 = vmatprep.subr.mxu0 0.0
    %1341 = vmatpush1.msra.mxu0 0.0
    %1342 = vmatprep.subr.mxu0 0.0
    %1343 = vmatpush1.msra.mxu0 0.0
    %1344 = vmatprep.subr.mxu0 0.0
    %1345 = vmatpush1.msra.mxu0 0.0
    %1346 = vmatprep.subr.mxu0 0.0
    %1347 = vmatpush1.msra.mxu0 %v1120
    %1348 = vmatprep.subr.mxu0 0.0
    %1349 = vmatpush1.msra.mxu0 %v1119
    %1350 = vmatprep.subr.mxu0 0.0
    %1351 = vmatpush1.msra.mxu0 %v1118
    %1352 = vmatprep.subr.mxu0 0.0
    %1353 = vmatpush1.msra.mxu0 %v1117
    %1354 = vmatprep.subr.mxu0 0.0
    %1355 = vmatpush2.msra.mxu0 0.0
    %1356 = vmatprep.subr.mxu0 0.0
    %1357 = vmatpush2.msra.mxu0 0.0
    %1358 = vmatprep.subr.mxu0 0.0
    %1359 = vmatpush2.msra.mxu0 0.0
    %1360 = vmatprep.subr.mxu0 0.0
    %1361 = vmatpush2.msra.mxu0 0.0
    %1362 = vmatprep.subr.mxu0 0.0
    %1363 = vmatpush2.msra.mxu0 0.0
    %1364 = vmatprep.subr.mxu0 0.0
    %1365 = vmatpush2.msra.mxu0 0.0
    %1366 = vmatprep.subr.mxu0 0.0
    %1367 = vmatpush2.msra.mxu0 0.0
    %1368 = vmatprep.subr.mxu0 0.0
    %1369 = vmatpush2.msra.mxu0 0.0
    %1370 = vmatprep.subr.mxu0 0.0
    %1371 = vmatpush2.msra.mxu0 0.0
    %1372 = vmatprep.subr.mxu0 0.0
    %1373 = vmatpush2.msra.mxu0 0.0
    %1374 = vmatprep.subr.mxu0 0.0
    %1375 = vmatpush2.msra.mxu0 0.0
    %1376 = vmatprep.subr.mxu0 0.0
    %1377 = vmatpush2.msra.mxu0 0.0
    %1378 = vmatprep.subr.mxu0 0.0
    %1379 = vmatpush2.msra.mxu0 0.0
    %1380 = vmatprep.subr.mxu0 0.0
    %1381 = vmatpush2.msra.mxu0 0.0
    %1382 = vmatprep.subr.mxu0 0.0
    %1383 = vmatpush2.msra.mxu0 0.0
    %1384 = vmatprep.subr.mxu0 0.0
    %1385 = vmatpush2.msra.mxu0 0.0
    %1386 = vmatprep.mubr.f32.mxu0 0.0
    %1387 = vmatmul.mubr.f32.gmra.mxu0 %v1320
    %v1388 = vpop.f32.mrf.mxu0
    %v1389 = vadd.f32 0.0, %v1388
    %v1390 = vpop.f32.mrf.mxu0
    %1391 = vdwg.mxu0
    %v1393 = vrot.slane %v1389, 6
    %v1395 = vadd.f32 %v1201, %v1393
    %v1396 = vxor.u32 %v1395, 2147483648
    %v1397 = vmul.f32 %v1396, 1.442695
    %v1398 = vpow.pop %v1397
    %v1399 = vadd.f32 %v1398, 1.0
    %v1400 = vrcp.pop %v1399
    %v1401 = vmul.f32 1.0, %v1400
    %v1402 = vtanh.pop %v1395
    %v1404 = vrot.slane %v1308, 6
    %v1406 = vmul.f32 %v1401, %v1404
    %1408 = vrot.lane.b32.xlu0 %v1402, 64
    %v1409 = vpop.permute.xlu0 %1408
    %v1411 = vmul.f32 %v1401, %v1409
    %1413 = vrot.lane.b32.xlu0 %v1411, 32
    %v1414 = vpop.permute.xlu0 %1413
    %v1416 = vadd.f32 %v1406, %v1414
    %v1417 = vtanh.pop %v1416
    %1419 = vrot.lane.b32.xlu0 %v1417, 64
    %v1420 = vpop.permute.xlu0 %1419
    %v1422 = vmul.f32 %v1401, %v1420
    %1424 = vrot.lane.b32.xlu0 %v1422, 32
    %v1425 = vpop.permute.xlu0 %1424
    %1427 = vst.msk [vmem:[#allocation2] sm:$0xc] %vm441, %v1425
    %v1428 = vrot.slane %v1422, 2
    %1429 = vrot.lane.b32.xlu0 %v1428, 32
    %v1430 = vpop.permute.xlu0 %1429
    %v1431 = vsel %vm142, %v1430, 0
    %1433 = vmatprep.subr.mxu0 0.0
    %1434 = vmatpush1.msra.mxu0 0.0
    %1435 = vmatprep.subr.mxu0 0.0
    %1436 = vmatpush1.msra.mxu0 0.0
    %1437 = vmatprep.subr.mxu0 0.0
    %1438 = vmatpush1.msra.mxu0 0.0
    %1439 = vmatprep.subr.mxu0 0.0
    %1440 = vmatpush1.msra.mxu0 0.0
    %1441 = vmatprep.subr.mxu0 0.0
    %1442 = vmatpush1.msra.mxu0 0.0
    %1443 = vmatprep.subr.mxu0 0.0
    %1444 = vmatpush1.msra.mxu0 0.0
    %1445 = vmatprep.subr.mxu0 0.0
    %1446 = vmatpush1.msra.mxu0 0.0
    %1447 = vmatprep.subr.mxu0 0.0
    %1448 = vmatpush1.msra.mxu0 0.0
    %1449 = vmatprep.subr.mxu0 0.0
    %1450 = vmatpush1.msra.mxu0 0.0
    %1451 = vmatprep.subr.mxu0 0.0
    %1452 = vmatpush1.msra.mxu0 0.0
    %1453 = vmatprep.subr.mxu0 0.0
    %1454 = vmatpush1.msra.mxu0 0.0
    %1455 = vmatprep.subr.mxu0 0.0
    %1456 = vmatpush1.msra.mxu0 0.0
    %1457 = vmatprep.subr.mxu0 0.0
    %1458 = vmatpush1.msra.mxu0 %v1120
    %1459 = vmatprep.subr.mxu0 0.0
    %1460 = vmatpush1.msra.mxu0 %v1119
    %1461 = vmatprep.subr.mxu0 0.0
    %1462 = vmatpush1.msra.mxu0 %v1118
    %1463 = vmatprep.subr.mxu0 0.0
    %1464 = vmatpush1.msra.mxu0 %v1117
    %1465 = vmatprep.subr.mxu0 0.0
    %1466 = vmatpush2.msra.mxu0 0.0
    %1467 = vmatprep.subr.mxu0 0.0
    %1468 = vmatpush2.msra.mxu0 0.0
    %1469 = vmatprep.subr.mxu0 0.0
    %1470 = vmatpush2.msra.mxu0 0.0
    %1471 = vmatprep.subr.mxu0 0.0
    %1472 = vmatpush2.msra.mxu0 0.0
    %1473 = vmatprep.subr.mxu0 0.0
    %1474 = vmatpush2.msra.mxu0 0.0
    %1475 = vmatprep.subr.mxu0 0.0
    %1476 = vmatpush2.msra.mxu0 0.0
    %1477 = vmatprep.subr.mxu0 0.0
    %1478 = vmatpush2.msra.mxu0 0.0
    %1479 = vmatprep.subr.mxu0 0.0
    %1480 = vmatpush2.msra.mxu0 0.0
    %1481 = vmatprep.subr.mxu0 0.0
    %1482 = vmatpush2.msra.mxu0 0.0
    %1483 = vmatprep.subr.mxu0 0.0
    %1484 = vmatpush2.msra.mxu0 0.0
    %1485 = vmatprep.subr.mxu0 0.0
    %1486 = vmatpush2.msra.mxu0 0.0
    %1487 = vmatprep.subr.mxu0 0.0
    %1488 = vmatpush2.msra.mxu0 0.0
    %1489 = vmatprep.subr.mxu0 0.0
    %1490 = vmatpush2.msra.mxu0 0.0
    %1491 = vmatprep.subr.mxu0 0.0
    %1492 = vmatpush2.msra.mxu0 0.0
    %1493 = vmatprep.subr.mxu0 0.0
    %1494 = vmatpush2.msra.mxu0 0.0
    %1495 = vmatprep.subr.mxu0 0.0
    %1496 = vmatpush2.msra.mxu0 0.0
    %1497 = vmatprep.mubr.f32.mxu0 0.0
    %1498 = vmatmul.mubr.f32.gmra.mxu0 %v1431
    %v1499 = vpop.f32.mrf.mxu0
    %v1500 = vadd.f32 0.0, %v1499
    %v1501 = vpop.f32.mrf.mxu0
    %1502 = vdwg.mxu0
    %v1504 = vrot.slane %v1500, 4
    %v1506 = vadd.f32 %v1201, %v1504
    %v1507 = vxor.u32 %v1506, 2147483648
    %v1508 = vmul.f32 %v1507, 1.442695
    %v1509 = vpow.pop %v1508
    %v1510 = vadd.f32 %v1509, 1.0
    %v1511 = vrcp.pop %v1510
    %v1512 = vmul.f32 1.0, %v1511
    %v1513 = vtanh.pop %v1506
    %v1515 = vrot.slane %v1416, 6
    %v1517 = vmul.f32 %v1512, %v1515
    %1519 = vrot.lane.b32.xlu0 %v1513, 64
    %v1520 = vpop.permute.xlu0 %1519
    %v1522 = vmul.f32 %v1512, %v1520
    %1524 = vrot.lane.b32.xlu0 %v1522, 32
    %v1525 = vpop.permute.xlu0 %1524
    %v1527 = vadd.f32 %v1517, %v1525
    %v1528 = vtanh.pop %v1527
    %1530 = vrot.lane.b32.xlu0 %v1528, 64
    %v1531 = vpop.permute.xlu0 %1530
    %v1533 = vmul.f32 %v1512, %v1531
    %1535 = vrot.lane.b32.xlu0 %v1533, 32
    %v1536 = vpop.permute.xlu0 %1535
    %1538 = vst.msk [vmem:[#allocation2] sm:$0x30] %vm553, %v1536
    %v1539 = vrot.slane %v1533, 4
    %1540 = vrot.lane.b32.xlu0 %v1539, 32
    %v1541 = vpop.permute.xlu0 %1540
    %v1542 = vsel %vm142, %v1541, 0
    %1544 = vmatprep.subr.mxu0 0.0
    %1545 = vmatpush1.msra.mxu0 0.0
    %1546 = vmatprep.subr.mxu0 0.0
    %1547 = vmatpush1.msra.mxu0 0.0
    %1548 = vmatprep.subr.mxu0 0.0
    %1549 = vmatpush1.msra.mxu0 0.0
    %1550 = vmatprep.subr.mxu0 0.0
    %1551 = vmatpush1.msra.mxu0 0.0
    %1552 = vmatprep.subr.mxu0 0.0
    %1553 = vmatpush1.msra.mxu0 0.0
    %1554 = vmatprep.subr.mxu0 0.0
    %1555 = vmatpush1.msra.mxu0 0.0
    %1556 = vmatprep.subr.mxu0 0.0
    %1557 = vmatpush1.msra.mxu0 0.0
    %1558 = vmatprep.subr.mxu0 0.0
    %1559 = vmatpush1.msra.mxu0 0.0
    %1560 = vmatprep.subr.mxu0 0.0
    %1561 = vmatpush1.msra.mxu0 0.0
    %1562 = vmatprep.subr.mxu0 0.0
    %1563 = vmatpush1.msra.mxu0 0.0
    %1564 = vmatprep.subr.mxu0 0.0
    %1565 = vmatpush1.msra.mxu0 0.0
    %1566 = vmatprep.subr.mxu0 0.0
    %1567 = vmatpush1.msra.mxu0 0.0
    %1568 = vmatprep.subr.mxu0 0.0
    %1569 = vmatpush1.msra.mxu0 %v1120
    %1570 = vmatprep.subr.mxu0 0.0
    %1571 = vmatpush1.msra.mxu0 %v1119
    %1572 = vmatprep.subr.mxu0 0.0
    %1573 = vmatpush1.msra.mxu0 %v1118
    %1574 = vmatprep.subr.mxu0 0.0
    %1575 = vmatpush1.msra.mxu0 %v1117
    %1576 = vmatprep.subr.mxu0 0.0
    %1577 = vmatpush2.msra.mxu0 0.0
    %1578 = vmatprep.subr.mxu0 0.0
    %1579 = vmatpush2.msra.mxu0 0.0
    %1580 = vmatprep.subr.mxu0 0.0
    %1581 = vmatpush2.msra.mxu0 0.0
    %1582 = vmatprep.subr.mxu0 0.0
    %1583 = vmatpush2.msra.mxu0 0.0
    %1584 = vmatprep.subr.mxu0 0.0
    %1585 = vmatpush2.msra.mxu0 0.0
    %1586 = vmatprep.subr.mxu0 0.0
    %1587 = vmatpush2.msra.mxu0 0.0
    %1588 = vmatprep.subr.mxu0 0.0
    %1589 = vmatpush2.msra.mxu0 0.0
    %1590 = vmatprep.subr.mxu0 0.0
    %1591 = vmatpush2.msra.mxu0 0.0
    %1592 = vmatprep.subr.mxu0 0.0
    %1593 = vmatpush2.msra.mxu0 0.0
    %1594 = vmatprep.subr.mxu0 0.0
    %1595 = vmatpush2.msra.mxu0 0.0
    %1596 = vmatprep.subr.mxu0 0.0
    %1597 = vmatpush2.msra.mxu0 0.0
    %1598 = vmatprep.subr.mxu0 0.0
    %1599 = vmatpush2.msra.mxu0 0.0
    %1600 = vmatprep.subr.mxu0 0.0
    %1601 = vmatpush2.msra.mxu0 0.0
    %1602 = vmatprep.subr.mxu0 0.0
    %1603 = vmatpush2.msra.mxu0 0.0
    %1604 = vmatprep.subr.mxu0 0.0
    %1605 = vmatpush2.msra.mxu0 0.0
    %1606 = vmatprep.subr.mxu0 0.0
    %1607 = vmatpush2.msra.mxu0 0.0
    %1608 = vmatprep.mubr.f32.mxu0 0.0
    %1609 = vmatmul.mubr.f32.gmra.mxu0 %v1542
    %v1610 = vpop.f32.mrf.mxu0
    %v1611 = vadd.f32 0.0, %v1610
    %v1612 = vpop.f32.mrf.mxu0
    %1613 = vdwg.mxu0
    %v1615 = vrot.slane %v1611, 2
    %v1617 = vadd.f32 %v1201, %v1615
    %v1618 = vxor.u32 %v1617, 2147483648
    %v1619 = vmul.f32 %v1618, 1.442695
    %v1620 = vpow.pop %v1619
    %v1621 = vadd.f32 %v1620, 1.0
    %v1622 = vrcp.pop %v1621
    %v1623 = vmul.f32 1.0, %v1622
    %v1624 = vtanh.pop %v1617
    %v1626 = vrot.slane %v1527, 6
    %v1628 = vmul.f32 %v1623, %v1626
    %1630 = vrot.lane.b32.xlu0 %v1624, 64
    %v1631 = vpop.permute.xlu0 %1630
    %v1633 = vmul.f32 %v1623, %v1631
    %1635 = vrot.lane.b32.xlu0 %v1633, 32
    %v1636 = vpop.permute.xlu0 %1635
    %v1638 = vadd.f32 %v1628, %v1636
    %v1639 = vtanh.pop %v1638
    %1641 = vrot.lane.b32.xlu0 %v1639, 64
    %v1642 = vpop.permute.xlu0 %1641
    %v1644 = vmul.f32 %v1623, %v1642
    %1646 = vrot.lane.b32.xlu0 %v1644, 32
    %v1647 = vpop.permute.xlu0 %1646
    %1649 = vst.msk [vmem:[#allocation2] sm:$0xc0] %vm665, %v1647
    %v1650 = vrot.slane %v1644, 6
    %1651 = vrot.lane.b32.xlu0 %v1650, 32
    %v1652 = vpop.permute.xlu0 %1651
    %v1653 = vsel %vm142, %v1652, 0
    %1655 = vmatprep.subr.mxu0 0.0
    %1656 = vmatpush1.msra.mxu0 0.0
    %1657 = vmatprep.subr.mxu0 0.0
    %1658 = vmatpush1.msra.mxu0 0.0
    %1659 = vmatprep.subr.mxu0 0.0
    %1660 = vmatpush1.msra.mxu0 0.0
    %1661 = vmatprep.subr.mxu0 0.0
    %1662 = vmatpush1.msra.mxu0 0.0
    %1663 = vmatprep.subr.mxu0 0.0
    %1664 = vmatpush1.msra.mxu0 0.0
    %1665 = vmatprep.subr.mxu0 0.0
    %1666 = vmatpush1.msra.mxu0 0.0
    %1667 = vmatprep.subr.mxu0 0.0
    %1668 = vmatpush1.msra.mxu0 0.0
    %1669 = vmatprep.subr.mxu0 0.0
    %1670 = vmatpush1.msra.mxu0 0.0
    %1671 = vmatprep.subr.mxu0 0.0
    %1672 = vmatpush1.msra.mxu0 0.0
    %1673 = vmatprep.subr.mxu0 0.0
    %1674 = vmatpush1.msra.mxu0 0.0
    %1675 = vmatprep.subr.mxu0 0.0
    %1676 = vmatpush1.msra.mxu0 0.0
    %1677 = vmatprep.subr.mxu0 0.0
    %1678 = vmatpush1.msra.mxu0 0.0
    %1679 = vmatprep.subr.mxu0 0.0
    %1680 = vmatpush1.msra.mxu0 %v1120
    %1681 = vmatprep.subr.mxu0 0.0
    %1682 = vmatpush1.msra.mxu0 %v1119
    %1683 = vmatprep.subr.mxu0 0.0
    %1684 = vmatpush1.msra.mxu0 %v1118
    %1685 = vmatprep.subr.mxu0 0.0
    %1686 = vmatpush1.msra.mxu0 %v1117
    %1687 = vmatprep.subr.mxu0 0.0
    %1688 = vmatpush2.msra.mxu0 0.0
    %1689 = vmatprep.subr.mxu0 0.0
    %1690 = vmatpush2.msra.mxu0 0.0
    %1691 = vmatprep.subr.mxu0 0.0
    %1692 = vmatpush2.msra.mxu0 0.0
    %1693 = vmatprep.subr.mxu0 0.0
    %1694 = vmatpush2.msra.mxu0 0.0
    %1695 = vmatprep.subr.mxu0 0.0
    %1696 = vmatpush2.msra.mxu0 0.0
    %1697 = vmatprep.subr.mxu0 0.0
    %1698 = vmatpush2.msra.mxu0 0.0
    %1699 = vmatprep.subr.mxu0 0.0
    %1700 = vmatpush2.msra.mxu0 0.0
    %1701 = vmatprep.subr.mxu0 0.0
    %1702 = vmatpush2.msra.mxu0 0.0
    %1703 = vmatprep.subr.mxu0 0.0
    %1704 = vmatpush2.msra.mxu0 0.0
    %1705 = vmatprep.subr.mxu0 0.0
    %1706 = vmatpush2.msra.mxu0 0.0
    %1707 = vmatprep.subr.mxu0 0.0
    %1708 = vmatpush2.msra.mxu0 0.0
    %1709 = vmatprep.subr.mxu0 0.0
    %1710 = vmatpush2.msra.mxu0 0.0
    %1711 = vmatprep.subr.mxu0 0.0
    %1712 = vmatpush2.msra.mxu0 0.0
    %1713 = vmatprep.subr.mxu0 0.0
    %1714 = vmatpush2.msra.mxu0 0.0
    %1715 = vmatprep.subr.mxu0 0.0
    %1716 = vmatpush2.msra.mxu0 0.0
    %1717 = vmatprep.subr.mxu0 0.0
    %1718 = vmatpush2.msra.mxu0 0.0
    %1719 = vmatprep.mubr.f32.mxu0 0.0
    %1720 = vmatmul.mubr.f32.gmra.mxu0 %v1653
    %v1721 = vpop.f32.mrf.mxu0
    %v1722 = vadd.f32 0.0, %v1721
    %v1723 = vpop.f32.mrf.mxu0
    %1724 = vdwg.mxu0
    %v1725 = vadd.f32 %v1206, %v1722
    %v1726 = vxor.u32 %v1725, 2147483648
    %v1727 = vmul.f32 %v1726, 1.442695
    %v1728 = vpow.pop %v1727
    %v1729 = vadd.f32 %v1728, 1.0
    %v1730 = vrcp.pop %v1729
    %v1731 = vmul.f32 1.0, %v1730
    %v1732 = vtanh.pop %v1725
    %v1734 = vrot.slane %v1638, 6
    %v1736 = vmul.f32 %v1731, %v1734
    %1738 = vrot.lane.b32.xlu0 %v1732, 64
    %v1739 = vpop.permute.xlu0 %1738
    %v1741 = vmul.f32 %v1731, %v1739
    %1743 = vrot.lane.b32.xlu0 %v1741, 32
    %v1744 = vpop.permute.xlu0 %1743
    %v1746 = vadd.f32 %v1736, %v1744
    %v1747 = vtanh.pop %v1746
    %1749 = vrot.lane.b32.xlu0 %v1747, 64
    %v1750 = vpop.permute.xlu0 %1749
    %v1752 = vmul.f32 %v1731, %v1750
    %1754 = vrot.lane.b32.xlu0 %v1752, 32
    %v1755 = vpop.permute.xlu0 %1754
    %1757 = vst.msk [vmem:[#allocation2 + $0x8] sm:$0x3] %vm332, %v1755
    %v1758 = vsel %vm142, %v1755, 0
    %1760 = vmatprep.subr.mxu0 0.0
    %1761 = vmatpush1.msra.mxu0 0.0
    %1762 = vmatprep.subr.mxu0 0.0
    %1763 = vmatpush1.msra.mxu0 0.0
    %1764 = vmatprep.subr.mxu0 0.0
    %1765 = vmatpush1.msra.mxu0 0.0
    %1766 = vmatprep.subr.mxu0 0.0
    %1767 = vmatpush1.msra.mxu0 0.0
    %1768 = vmatprep.subr.mxu0 0.0
    %1769 = vmatpush1.msra.mxu0 0.0
    %1770 = vmatprep.subr.mxu0 0.0
    %1771 = vmatpush1.msra.mxu0 0.0
    %1772 = vmatprep.subr.mxu0 0.0
    %1773 = vmatpush1.msra.mxu0 0.0
    %1774 = vmatprep.subr.mxu0 0.0
    %1775 = vmatpush1.msra.mxu0 0.0
    %1776 = vmatprep.subr.mxu0 0.0
    %1777 = vmatpush1.msra.mxu0 0.0
    %1778 = vmatprep.subr.mxu0 0.0
    %1779 = vmatpush1.msra.mxu0 0.0
    %1780 = vmatprep.subr.mxu0 0.0
    %1781 = vmatpush1.msra.mxu0 0.0
    %1782 = vmatprep.subr.mxu0 0.0
    %1783 = vmatpush1.msra.mxu0 0.0
    %1784 = vmatprep.subr.mxu0 0.0
    %1785 = vmatpush1.msra.mxu0 %v1120
    %1786 = vmatprep.subr.mxu0 0.0
    %1787 = vmatpush1.msra.mxu0 %v1119
    %1788 = vmatprep.subr.mxu0 0.0
    %1789 = vmatpush1.msra.mxu0 %v1118
    %1790 = vmatprep.subr.mxu0 0.0
    %1791 = vmatpush1.msra.mxu0 %v1117
    %1792 = vmatprep.subr.mxu0 0.0
    %1793 = vmatpush2.msra.mxu0 0.0
    %1794 = vmatprep.subr.mxu0 0.0
    %1795 = vmatpush2.msra.mxu0 0.0
    %1796 = vmatprep.subr.mxu0 0.0
    %1797 = vmatpush2.msra.mxu0 0.0
    %1798 = vmatprep.subr.mxu0 0.0
    %1799 = vmatpush2.msra.mxu0 0.0
    %1800 = vmatprep.subr.mxu0 0.0
    %1801 = vmatpush2.msra.mxu0 0.0
    %1802 = vmatprep.subr.mxu0 0.0
    %1803 = vmatpush2.msra.mxu0 0.0
    %1804 = vmatprep.subr.mxu0 0.0
    %1805 = vmatpush2.msra.mxu0 0.0
    %1806 = vmatprep.subr.mxu0 0.0
    %1807 = vmatpush2.msra.mxu0 0.0
    %1808 = vmatprep.subr.mxu0 0.0
    %1809 = vmatpush2.msra.mxu0 0.0
    %1810 = vmatprep.subr.mxu0 0.0
    %1811 = vmatpush2.msra.mxu0 0.0
    %1812 = vmatprep.subr.mxu0 0.0
    %1813 = vmatpush2.msra.mxu0 0.0
    %1814 = vmatprep.subr.mxu0 0.0
    %1815 = vmatpush2.msra.mxu0 0.0
    %1816 = vmatprep.subr.mxu0 0.0
    %1817 = vmatpush2.msra.mxu0 0.0
    %1818 = vmatprep.subr.mxu0 0.0
    %1819 = vmatpush2.msra.mxu0 0.0
    %1820 = vmatprep.subr.mxu0 0.0
    %1821 = vmatpush2.msra.mxu0 0.0
    %1822 = vmatprep.subr.mxu0 0.0
    %1823 = vmatpush2.msra.mxu0 0.0
    %1824 = vmatprep.mubr.f32.mxu0 0.0
    %1825 = vmatmul.mubr.f32.gmra.mxu0 %v1758
    %v1826 = vpop.f32.mrf.mxu0
    %v1827 = vadd.f32 0.0, %v1826
    %v1828 = vpop.f32.mrf.mxu0
    %1829 = vdwg.mxu0
    %v1831 = vrot.slane %v1827, 6
    %v1833 = vadd.f32 %v1206, %v1831
    %v1834 = vxor.u32 %v1833, 2147483648
    %v1835 = vmul.f32 %v1834, 1.442695
    %v1836 = vpow.pop %v1835
    %v1837 = vadd.f32 %v1836, 1.0
    %v1838 = vrcp.pop %v1837
    %v1839 = vmul.f32 1.0, %v1838
    %v1840 = vtanh.pop %v1833
    %v1842 = vrot.slane %v1746, 6
    %v1844 = vmul.f32 %v1839, %v1842
    %1846 = vrot.lane.b32.xlu0 %v1840, 64
    %v1847 = vpop.permute.xlu0 %1846
    %v1849 = vmul.f32 %v1839, %v1847
    %1851 = vrot.lane.b32.xlu0 %v1849, 32
    %v1852 = vpop.permute.xlu0 %1851
    %v1854 = vadd.f32 %v1844, %v1852
    %v1855 = vtanh.pop %v1854
    %1857 = vrot.lane.b32.xlu0 %v1855, 64
    %v1858 = vpop.permute.xlu0 %1857
    %v1860 = vmul.f32 %v1839, %v1858
    %1862 = vrot.lane.b32.xlu0 %v1860, 32
    %v1863 = vpop.permute.xlu0 %1862
    %1865 = vst.msk [vmem:[#allocation2 + $0x8] sm:$0xc] %vm441, %v1863
    %v1866 = vrot.slane %v1860, 2
    %1867 = vrot.lane.b32.xlu0 %v1866, 32
    %v1868 = vpop.permute.xlu0 %1867
    %v1869 = vsel %vm142, %v1868, 0
    %1871 = vmatprep.subr.mxu0 0.0
    %1872 = vmatpush1.msra.mxu0 0.0
    %1873 = vmatprep.subr.mxu0 0.0
    %1874 = vmatpush1.msra.mxu0 0.0
    %1875 = vmatprep.subr.mxu0 0.0
    %1876 = vmatpush1.msra.mxu0 0.0
    %1877 = vmatprep.subr.mxu0 0.0
    %1878 = vmatpush1.msra.mxu0 0.0
    %1879 = vmatprep.subr.mxu0 0.0
    %1880 = vmatpush1.msra.mxu0 0.0
    %1881 = vmatprep.subr.mxu0 0.0
    %1882 = vmatpush1.msra.mxu0 0.0
    %1883 = vmatprep.subr.mxu0 0.0
    %1884 = vmatpush1.msra.mxu0 0.0
    %1885 = vmatprep.subr.mxu0 0.0
    %1886 = vmatpush1.msra.mxu0 0.0
    %1887 = vmatprep.subr.mxu0 0.0
    %1888 = vmatpush1.msra.mxu0 0.0
    %1889 = vmatprep.subr.mxu0 0.0
    %1890 = vmatpush1.msra.mxu0 0.0
    %1891 = vmatprep.subr.mxu0 0.0
    %1892 = vmatpush1.msra.mxu0 0.0
    %1893 = vmatprep.subr.mxu0 0.0
    %1894 = vmatpush1.msra.mxu0 0.0
    %1895 = vmatprep.subr.mxu0 0.0
    %1896 = vmatpush1.msra.mxu0 %v1120
    %1897 = vmatprep.subr.mxu0 0.0
    %1898 = vmatpush1.msra.mxu0 %v1119
    %1899 = vmatprep.subr.mxu0 0.0
    %1900 = vmatpush1.msra.mxu0 %v1118
    %1901 = vmatprep.subr.mxu0 0.0
    %1902 = vmatpush1.msra.mxu0 %v1117
    %1903 = vmatprep.subr.mxu0 0.0
    %1904 = vmatpush2.msra.mxu0 0.0
    %1905 = vmatprep.subr.mxu0 0.0
    %1906 = vmatpush2.msra.mxu0 0.0
    %1907 = vmatprep.subr.mxu0 0.0
    %1908 = vmatpush2.msra.mxu0 0.0
    %1909 = vmatprep.subr.mxu0 0.0
    %1910 = vmatpush2.msra.mxu0 0.0
    %1911 = vmatprep.subr.mxu0 0.0
    %1912 = vmatpush2.msra.mxu0 0.0
    %1913 = vmatprep.subr.mxu0 0.0
    %1914 = vmatpush2.msra.mxu0 0.0
    %1915 = vmatprep.subr.mxu0 0.0
    %1916 = vmatpush2.msra.mxu0 0.0
    %1917 = vmatprep.subr.mxu0 0.0
    %1918 = vmatpush2.msra.mxu0 0.0
    %1919 = vmatprep.subr.mxu0 0.0
    %1920 = vmatpush2.msra.mxu0 0.0
    %1921 = vmatprep.subr.mxu0 0.0
    %1922 = vmatpush2.msra.mxu0 0.0
    %1923 = vmatprep.subr.mxu0 0.0
    %1924 = vmatpush2.msra.mxu0 0.0
    %1925 = vmatprep.subr.mxu0 0.0
    %1926 = vmatpush2.msra.mxu0 0.0
    %1927 = vmatprep.subr.mxu0 0.0
    %1928 = vmatpush2.msra.mxu0 0.0
    %1929 = vmatprep.subr.mxu0 0.0
    %1930 = vmatpush2.msra.mxu0 0.0
    %1931 = vmatprep.subr.mxu0 0.0
    %1932 = vmatpush2.msra.mxu0 0.0
    %1933 = vmatprep.subr.mxu0 0.0
    %1934 = vmatpush2.msra.mxu0 0.0
    %1935 = vmatprep.mubr.f32.mxu0 0.0
    %1936 = vmatmul.mubr.f32.gmra.mxu0 %v1869
    %v1937 = vpop.f32.mrf.mxu0
    %v1938 = vadd.f32 0.0, %v1937
    %v1939 = vpop.f32.mrf.mxu0
    %1940 = vdwg.mxu0
    %v1942 = vrot.slane %v1938, 4
    %v1944 = vadd.f32 %v1206, %v1942
    %v1945 = vxor.u32 %v1944, 2147483648
    %v1946 = vmul.f32 %v1945, 1.442695
    %v1947 = vpow.pop %v1946
    %v1948 = vadd.f32 %v1947, 1.0
    %v1949 = vrcp.pop %v1948
    %v1950 = vmul.f32 1.0, %v1949
    %v1951 = vtanh.pop %v1944
    %v1953 = vrot.slane %v1854, 6
    %v1955 = vmul.f32 %v1950, %v1953
    %1957 = vrot.lane.b32.xlu0 %v1951, 64
    %v1958 = vpop.permute.xlu0 %1957
    %v1960 = vmul.f32 %v1950, %v1958
    %1962 = vrot.lane.b32.xlu0 %v1960, 32
    %v1963 = vpop.permute.xlu0 %1962
    %v1965 = vadd.f32 %v1955, %v1963
    %v1966 = vtanh.pop %v1965
    %1968 = vrot.lane.b32.xlu0 %v1966, 64
    %v1969 = vpop.permute.xlu0 %1968
    %v1971 = vmul.f32 %v1950, %v1969
    %1973 = vrot.lane.b32.xlu0 %v1971, 32
    %v1974 = vpop.permute.xlu0 %1973
    %1976 = vst.msk [vmem:[#allocation2 + $0x8] sm:$0x30] %vm553, %v1974
    %v1977 = vrot.slane %v1971, 4
    %1978 = vrot.lane.b32.xlu0 %v1977, 32
    %v1979 = vpop.permute.xlu0 %1978
    %v1980 = vsel %vm142, %v1979, 0
    %1982 = vmatprep.subr.mxu0 0.0
    %1983 = vmatpush1.msra.mxu0 0.0
    %1984 = vmatprep.subr.mxu0 0.0
    %1985 = vmatpush1.msra.mxu0 0.0
    %1986 = vmatprep.subr.mxu0 0.0
    %1987 = vmatpush1.msra.mxu0 0.0
    %1988 = vmatprep.subr.mxu0 0.0
    %1989 = vmatpush1.msra.mxu0 0.0
    %1990 = vmatprep.subr.mxu0 0.0
    %1991 = vmatpush1.msra.mxu0 0.0
    %1992 = vmatprep.subr.mxu0 0.0
    %1993 = vmatpush1.msra.mxu0 0.0
    %1994 = vmatprep.subr.mxu0 0.0
    %1995 = vmatpush1.msra.mxu0 0.0
    %1996 = vmatprep.subr.mxu0 0.0
    %1997 = vmatpush1.msra.mxu0 0.0
    %1998 = vmatprep.subr.mxu0 0.0
    %1999 = vmatpush1.msra.mxu0 0.0
    %2000 = vmatprep.subr.mxu0 0.0
    %2001 = vmatpush1.msra.mxu0 0.0
    %2002 = vmatprep.subr.mxu0 0.0
    %2003 = vmatpush1.msra.mxu0 0.0
    %2004 = vmatprep.subr.mxu0 0.0
    %2005 = vmatpush1.msra.mxu0 0.0
    %2006 = vmatprep.subr.mxu0 0.0
    %2007 = vmatpush1.msra.mxu0 %v1120
    %2008 = vmatprep.subr.mxu0 0.0
    %2009 = vmatpush1.msra.mxu0 %v1119
    %2010 = vmatprep.subr.mxu0 0.0
    %2011 = vmatpush1.msra.mxu0 %v1118
    %2012 = vmatprep.subr.mxu0 0.0
    %2013 = vmatpush1.msra.mxu0 %v1117
    %2014 = vmatprep.subr.mxu0 0.0
    %2015 = vmatpush2.msra.mxu0 0.0
    %2016 = vmatprep.subr.mxu0 0.0
    %2017 = vmatpush2.msra.mxu0 0.0
    %2018 = vmatprep.subr.mxu0 0.0
    %2019 = vmatpush2.msra.mxu0 0.0
    %2020 = vmatprep.subr.mxu0 0.0
    %2021 = vmatpush2.msra.mxu0 0.0
    %2022 = vmatprep.subr.mxu0 0.0
    %2023 = vmatpush2.msra.mxu0 0.0
    %2024 = vmatprep.subr.mxu0 0.0
    %2025 = vmatpush2.msra.mxu0 0.0
    %2026 = vmatprep.subr.mxu0 0.0
    %2027 = vmatpush2.msra.mxu0 0.0
    %2028 = vmatprep.subr.mxu0 0.0
    %2029 = vmatpush2.msra.mxu0 0.0
    %2030 = vmatprep.subr.mxu0 0.0
    %2031 = vmatpush2.msra.mxu0 0.0
    %2032 = vmatprep.subr.mxu0 0.0
    %2033 = vmatpush2.msra.mxu0 0.0
    %2034 = vmatprep.subr.mxu0 0.0
    %2035 = vmatpush2.msra.mxu0 0.0
    %2036 = vmatprep.subr.mxu0 0.0
    %2037 = vmatpush2.msra.mxu0 0.0
    %2038 = vmatprep.subr.mxu0 0.0
    %2039 = vmatpush2.msra.mxu0 0.0
    %2040 = vmatprep.subr.mxu0 0.0
    %2041 = vmatpush2.msra.mxu0 0.0
    %2042 = vmatprep.subr.mxu0 0.0
    %2043 = vmatpush2.msra.mxu0 0.0
    %2044 = vmatprep.subr.mxu0 0.0
    %2045 = vmatpush2.msra.mxu0 0.0
    %2046 = vmatprep.mubr.f32.mxu0 0.0
    %2047 = vmatmul.mubr.f32.gmra.mxu0 %v1980
    %v2048 = vpop.f32.mrf.mxu0
    %v2049 = vadd.f32 0.0, %v2048
    %v2050 = vpop.f32.mrf.mxu0
    %2051 = vdwg.mxu0
    %v2053 = vrot.slane %v2049, 2
    %v2055 = vadd.f32 %v1206, %v2053
    %v2056 = vxor.u32 %v2055, 2147483648
    %v2057 = vmul.f32 %v2056, 1.442695
    %v2058 = vpow.pop %v2057
    %v2059 = vadd.f32 %v2058, 1.0
    %v2060 = vrcp.pop %v2059
    %v2061 = vmul.f32 1.0, %v2060
    %v2062 = vtanh.pop %v2055
    %v2064 = vrot.slane %v1965, 6
    %v2066 = vmul.f32 %v2061, %v2064
    %2068 = vrot.lane.b32.xlu0 %v2062, 64
    %v2069 = vpop.permute.xlu0 %2068
    %v2071 = vmul.f32 %v2061, %v2069
    %2073 = vrot.lane.b32.xlu0 %v2071, 32
    %v2074 = vpop.permute.xlu0 %2073
    %v2076 = vadd.f32 %v2066, %v2074
    %v2077 = vtanh.pop %v2076
    %2079 = vrot.lane.b32.xlu0 %v2077, 64
    %v2080 = vpop.permute.xlu0 %2079
    %v2082 = vmul.f32 %v2061, %v2080
    %2084 = vrot.lane.b32.xlu0 %v2082, 32
    %v2085 = vpop.permute.xlu0 %2084
    %2087 = vst.msk [vmem:[#allocation2 + $0x8] sm:$0xc0] %vm665, %v2085
    %s2088 = scalar_lea.vmem [#allocation15], 2
    %2089 = vst.msk [vmem:[%s2088 - $0x6] sm:$0xc0] %vm665, %v2085
    %2091 = vrot.lane.b32.xlu0 %v2076, 96
    %v2092 = vpop.permute.xlu0 %2091
    %s2094 = scalar_lea.vmem [#allocation17], 2
    %2095 = vst.msk [vmem:[%s2094 - $0x6] sm:$0xc0] %vm665, %v2092
    %v2096 = vld [vmem:[#allocation2] sm:$0xff]
    %v2097 = vld [vmem:[#allocation2 + $0x8] sm:$0xff]
    %v2098 = vld [vmem:[#allocation12] sm:$0xff]
    %v2099 = vld [vmem:[#allocation12 + $0x8] sm:$0xff]
    %v2100 = vld [vmem:[#allocation12 + $0x10] sm:$0xff]
    %v2101 = vld [vmem:[#allocation12 + $0x18] sm:$0xff]
    %v2102 = vld [vmem:[%s8] sm:$0x1]
    %v2104 = vlaneseq
    %v2105 = vshrl.u32 %v2104, 7
    %v2106 = vsub.s32 0, %v2105
    %v2107 = vrot.slane %v2102, %v2106
    %v2110 = vsel %vm142, %v2096, 0
    %v2113 = vsel %vm142, %v2097, 0
    %2115 = vmatprep.subr.mxu0 0.0
    %2116 = vmatpush1.msra.mxu0 0.0
    %2117 = vmatprep.subr.mxu0 0.0
    %2118 = vmatpush1.msra.mxu0 0.0
    %2119 = vmatprep.subr.mxu0 0.0
    %2120 = vmatpush1.msra.mxu0 0.0
    %2121 = vmatprep.subr.mxu0 0.0
    %2122 = vmatpush1.msra.mxu0 0.0
    %2123 = vmatprep.subr.mxu0 0.0
    %2124 = vmatpush1.msra.mxu0 0.0
    %2125 = vmatprep.subr.mxu0 0.0
    %2126 = vmatpush1.msra.mxu0 0.0
    %2127 = vmatprep.subr.mxu0 0.0
    %2128 = vmatpush1.msra.mxu0 0.0
    %2129 = vmatprep.subr.mxu0 0.0
    %2130 = vmatpush1.msra.mxu0 0.0
    %2131 = vmatprep.subr.mxu0 0.0
    %2132 = vmatpush1.msra.mxu0 0.0
    %2133 = vmatprep.subr.mxu0 0.0
    %2134 = vmatpush1.msra.mxu0 0.0
    %2135 = vmatprep.subr.mxu0 0.0
    %2136 = vmatpush1.msra.mxu0 0.0
    %2137 = vmatprep.subr.mxu0 0.0
    %2138 = vmatpush1.msra.mxu0 0.0
    %2139 = vmatprep.subr.mxu0 0.0
    %2140 = vmatpush1.msra.mxu0 %v2101
    %2141 = vmatprep.subr.mxu0 0.0
    %2142 = vmatpush1.msra.mxu0 %v2100
    %2143 = vmatprep.subr.mxu0 0.0
    %2144 = vmatpush1.msra.mxu0 %v2099
    %2145 = vmatprep.subr.mxu0 0.0
    %2146 = vmatpush1.msra.mxu0 %v2098
    %2147 = vmatprep.subr.mxu0 0.0
    %2148 = vmatpush2.msra.mxu0 0.0
    %2149 = vmatprep.subr.mxu0 0.0
    %2150 = vmatpush2.msra.mxu0 0.0
    %2151 = vmatprep.subr.mxu0 0.0
    %2152 = vmatpush2.msra.mxu0 0.0
    %2153 = vmatprep.subr.mxu0 0.0
    %2154 = vmatpush2.msra.mxu0 0.0
    %2155 = vmatprep.subr.mxu0 0.0
    %2156 = vmatpush2.msra.mxu0 0.0
    %2157 = vmatprep.subr.mxu0 0.0
    %2158 = vmatpush2.msra.mxu0 0.0
    %2159 = vmatprep.subr.mxu0 0.0
    %2160 = vmatpush2.msra.mxu0 0.0
    %2161 = vmatprep.subr.mxu0 0.0
    %2162 = vmatpush2.msra.mxu0 0.0
    %2163 = vmatprep.subr.mxu0 0.0
    %2164 = vmatpush2.msra.mxu0 0.0
    %2165 = vmatprep.subr.mxu0 0.0
    %2166 = vmatpush2.msra.mxu0 0.0
    %2167 = vmatprep.subr.mxu0 0.0
    %2168 = vmatpush2.msra.mxu0 0.0
    %2169 = vmatprep.subr.mxu0 0.0
    %2170 = vmatpush2.msra.mxu0 0.0
    %2171 = vmatprep.subr.mxu0 0.0
    %2172 = vmatpush2.msra.mxu0 0.0
    %2173 = vmatprep.subr.mxu0 0.0
    %2174 = vmatpush2.msra.mxu0 0.0
    %2175 = vmatprep.subr.mxu0 0.0
    %2176 = vmatpush2.msra.mxu0 0.0
    %2177 = vmatprep.subr.mxu0 0.0
    %2178 = vmatpush2.msra.mxu0 0.0
    %2179 = vmatprep.mubr.f32.mxu0 0.0
    %2180 = vmatmul.mubr.f32.gmra.mxu0 %v2110
    %v2181 = vpop.f32.mrf.mxu0
    %v2182 = vadd.f32 %v2107, %v2181
    %v2183 = vpop.f32.mrf.mxu0
    %2184 = vmatprep.mubr.f32.mxu0 0.0
    %2185 = vmatmul.mubr.f32.gmra.mxu0 %v2113
    %v2186 = vpop.f32.mrf.mxu0
    %v2187 = vadd.f32 %v2107, %v2186
    %v2188 = vpop.f32.mrf.mxu0
    %2189 = vdwg.mxu0
    %2190 = vst.msk [vmem:[#allocation14] sm:$0xff] %vm142, %v2182
    %2191 = vst.msk [vmem:[#allocation14 + $0x8] sm:$0xff] %vm142, %v2187
    // Predicated region
    $region70: #{tpu_custom_call.1} parent=1 // pred_check
      _
    $region71: #{tpu_custom_call.1} parent=1 // pred_check_branch
      %2193 = sbr.rel (0) target = $region73
    $region72: #{tpu_custom_call.1} parent=1 // pred_region
      %s2195 = ssub.s32 256, 256
      %2196 = vsyncadd [#allocation5], %s2195
      %s2197 = sshll.u32 [#allocation14], 4
      %s2198 = int_to_ptr.vmem [resolvable:$true] %s2197
      %2203 = dma.vmem_to_hbm [thread:$0]  %s2198, 256, %s11, [#allocation5], 128, 128, 8
    $region73: #{tpu_custom_call.1} parent=1 // pred_fallthru
      _
    // Predicated region
    $region74: #{tpu_custom_call.1} parent=1 // pred_check
      _
    $region75: #{tpu_custom_call.1} parent=1 // pred_check_branch
      %2205 = sbr.rel (0) target = $region77
    $region76: #{tpu_custom_call.1} parent=1 // pred_region
      %s2207 = ssub.s32 64, 64
      %2208 = vsyncadd [#allocation16], %s2207
      %s2209 = sshll.u32 [#allocation15], 4
      %s2210 = int_to_ptr.vmem [resolvable:$true] %s2209
      %2215 = dma.vmem_to_hbm [thread:$0]  %s2210, 64, %s12, [#allocation16], 32, 32, 2
    $region77: #{tpu_custom_call.1} parent=1 // pred_fallthru
      _
    // Predicated region
    $region78: #{tpu_custom_call.1} parent=1 // pred_check
      _
    $region79: #{tpu_custom_call.1} parent=1 // pred_check_branch
      %2217 = sbr.rel (0) target = $region81
    $region80: #{tpu_custom_call.1} parent=1 // pred_region
      %s2219 = ssub.s32 64, 64
      %2220 = vsyncadd [#allocation16], %s2219
      %s2221 = sshll.u32 [#allocation17], 4
      %s2222 = int_to_ptr.vmem [resolvable:$true] %s2221
      %2227 = dma.vmem_to_hbm [thread:$0]  %s2222, 64, %s13, [#allocation16], 32, 32, 2
    $region81: #{tpu_custom_call.1} parent=1 // pred_fallthru
      _
    // Predicated region
    $region82: #{tpu_custom_call.1} parent=1 // pred_check
      _
    $region83: #{tpu_custom_call.1} parent=1 // pred_check_branch
      %2229 = sbr.rel (0) target = $region85
    $region84: #{tpu_custom_call.1} parent=1 // pred_region
      %2230 = dma.done [#allocation5], 256
    $region85: #{tpu_custom_call.1} parent=1 // pred_fallthru
      _
    // Predicated region
    $region86: #{tpu_custom_call.1} parent=1 // pred_check
      _
    $region87: #{tpu_custom_call.1} parent=1 // pred_check_branch
      %2232 = sbr.rel (0) target = $region89
    $region88: #{tpu_custom_call.1} parent=1 // pred_region
      %2233 = dma.done [#allocation16], 64
    $region89: #{tpu_custom_call.1} parent=1 // pred_fallthru
      _
    // Predicated region
    $region90: #{tpu_custom_call.1} parent=1 // pred_check
      _
    $region91: #{tpu_custom_call.1} parent=1 // pred_check_branch
      %2235 = sbr.rel (0) target = $region93
    $region92: #{tpu_custom_call.1} parent=1 // pred_region
      %2236 = dma.done [#allocation16], 64
    $region93: #{tpu_custom_call.1} parent=1 // pred_fallthru
      _
    %2237 = vsyncpa [#allocation4], 1
    %2238 = vsyncpa [#allocation7], 1
    %2239 = vsyncpa [#allocation10], 1
    %2240 = vsyncpa [#allocation13], 1
    %2241 = vsyncpa [#allocation5], 1
    %2242 = vsyncpa [#allocation16], 1

</llo_original>
